<compile_context>
chip_gen: v6e
topology: v6e:2x2x1
jax: 0.10.0
libtpu: 0.0.40
codegen_flags: <defaults>
</compile_context>

<pallas_src>
import functools

import jax
import jax.numpy as jnp
from jax.experimental import pallas as pl
from jax.experimental.pallas import tpu as pltpu

D_MODEL = 256
OUTPUT_DIM = 3
CLASS_SIZE = 2
SEQ_LEN = 10
FEAT = 20
IN_FEAT = SEQ_LEN * FEAT                 # 200 (flattened x features)
OUT_PAD = 128                            # lane-aligned padded output dim
N_RES = 7                                # number of residual linear layers
MAX_TILE_B = 1024                        # upper bound on batch-tile rows


def _round_up(n, m):
    return ((n + m - 1) // m) * m


def _use_bf16_carry():
    """bf16 activation carry on chips with a bf16 VPU (v6e/v7x); f32 on v5e."""
    try:
        kind = jax.devices()[0].device_kind.lower()
    except Exception:
        return True
    return not ("v5e" in kind or "v5 lite" in kind or "v5lite" in kind)


BF16_CARRY = _use_bf16_carry()


def mlp_kernel(x_ref, lab_ref, wpx_ref, wplb_ref, wl_ref, bl_ref, wo_ref,
               bo_ref, o_ref, *, bf16_carry):
    # x_ref   : (TB, 200) bf16      lab_ref : (TB, 1) int32
    # wpx_ref : (200, 256) bf16     wplb_ref: (2, 256) f32 (label row + proj bias)
    # wl_ref  : (7, 256, 256) bf16  bl_ref  : (7, 1, 256) f32
    # wo_ref  : (256, 128) bf16     bo_ref  : (1, 128) f32
    # o_ref   : (TB, 128) bf16

    # Projection: x @ Wp[:200] + (Wp[200 + label] + bp), then ReLU (f32 accumulate).
    acc = jnp.dot(x_ref[...], wpx_ref[...], preferred_element_type=jnp.float32)
    lab_contrib = jnp.where(lab_ref[...] == 0,
                            wplb_ref[0:1, :], wplb_ref[1:2, :])   # (TB, 256) f32
    h32 = jnp.maximum(acc + lab_contrib, 0.0)

    # 7 residual blocks: h = relu(h @ W_i + b_i + h).
    # TODO(synk): training-mode dropout (p=0.1) would need pltpu PRNG bits;
    # eval-mode identity is implemented here.
    if bf16_carry:
        h = h32.astype(jnp.bfloat16)
        blb = bl_ref[...].astype(jnp.bfloat16)           # tiny (7,1,256) cast
        for i in range(N_RES):
            d = jnp.dot(h, wl_ref[i], preferred_element_type=jnp.float32)
            h = jnp.maximum(d.astype(jnp.bfloat16) + h + blb[i], 0)
        h_mm = h
    else:  # v5e: no bf16 VALU -> keep f32 elementwise, cast only at the dot.
        h = h32
        for i in range(N_RES):
            d = jnp.dot(h.astype(jnp.bfloat16), wl_ref[i],
                        preferred_element_type=jnp.float32)
            h = jnp.maximum(d + h + bl_ref[i], 0.0)
        h_mm = h.astype(jnp.bfloat16)

    # Output head (padded to 128 lanes) + ReLU, written back as bf16.
    out = jnp.dot(h_mm, wo_ref[...], preferred_element_type=jnp.float32)
    o_ref[...] = jnp.maximum(out + bo_ref[...], 0.0).astype(o_ref.dtype)


def init_params(key):
    """Deterministic PyTorch-style uniform(-1/sqrt(fan_in), 1/sqrt(fan_in)) init."""
    def linear(k, fan_in, fan_out):
        kw, kb = jax.random.split(k)
        bound = 1.0 / jnp.sqrt(fan_in)
        w = jax.random.uniform(kw, (fan_in, fan_out), jnp.float32, -bound, bound)
        b = jax.random.uniform(kb, (fan_out,), jnp.float32, -bound, bound)
        return w, b

    ks = jax.random.split(key, 8)
    wp, bp = linear(ks[0], IN_FEAT + CLASS_SIZE, D_MODEL)       # (202, 256)
    wls, bls = [], []
    for i in range(N_RES):
        w, b = linear(ks[1 + i], D_MODEL, D_MODEL)
        wls.append(w)
        bls.append(b)
    wo, bo = linear(jax.random.fold_in(key, 99), D_MODEL, OUTPUT_DIM)

    wo_pad = jnp.zeros((D_MODEL, OUT_PAD), jnp.float32).at[:, :OUTPUT_DIM].set(wo)
    bo_pad = jnp.zeros((1, OUT_PAD), jnp.float32).at[0, :OUTPUT_DIM].set(bo)

    return dict(
        wpx=wp[:IN_FEAT, :].astype(jnp.bfloat16),               # (200, 256) bf16
        wplb=wp[IN_FEAT:, :] + bp[None, :],                     # (2, 256) f32 (bias folded)
        wl=jnp.stack(wls, 0).astype(jnp.bfloat16),              # (7, 256, 256) bf16
        bl=jnp.stack(bls, 0).reshape(N_RES, 1, D_MODEL),        # (7, 1, 256) f32
        wo=wo_pad.astype(jnp.bfloat16),                         # (256, 128) bf16
        bo=bo_pad,                                              # (1, 128) f32
    )


@jax.jit
def mlp_2_class_resnet_forward(x, label, params):
    """x: (B, 10, 20) float32, label: (B,) int32 in {0,1} -> (weight, off1, off2)."""
    B = x.shape[0]
    xf = x.reshape(B, IN_FEAT).astype(jnp.bfloat16)             # (B, 200) bf16
    lab = label.astype(jnp.int32).reshape(B, 1)                 # (B, 1)

    # Batch tile: full-batch tile for small B; for B > 256 split into >= 2 grid
    # steps (v7x megacore) capped at MAX_TILE_B rows; multiples of 16 (bf16 tiling).
    if B <= 256:
        tile_b = _round_up(B, 16)
    else:
        tile_b = min(MAX_TILE_B, _round_up(pl.cdiv(B, 2), 16))
    bp_rows = _round_up(B, tile_b)
    if bp_rows != B:
        xf = jnp.pad(xf, ((0, bp_rows - B), (0, 0)))
        lab = jnp.pad(lab, ((0, bp_rows - B), (0, 0)))
    grid = (bp_rows // tile_b,)

    # Weights stay on the same block for every grid step -> VMEM-resident.
    const = lambda shape: pl.BlockSpec(shape, lambda i: (0,) * len(shape))
    tiled = lambda shape: pl.BlockSpec(shape, lambda i: (i, 0))

    weight_bytes = (IN_FEAT * D_MODEL + N_RES * D_MODEL * D_MODEL
                    + D_MODEL * OUT_PAD) * 2 \
                   + (CLASS_SIZE + N_RES + 1) * D_MODEL * 4
    cost = pl.CostEstimate(
        flops=2 * bp_rows * D_MODEL * (IN_FEAT + N_RES * D_MODEL + OUT_PAD),
        transcendentals=0,
        bytes_accessed=weight_bytes + bp_rows * (IN_FEAT * 2 + 4 + OUT_PAD * 2),
    )

    kernel = functools.partial(mlp_kernel, bf16_carry=BF16_CARRY)

    out_pad = pl.pallas_call(
        kernel,
        grid=grid,
        in_specs=[
            tiled((tile_b, IN_FEAT)),                 # x (bf16)
            tiled((tile_b, 1)),                       # label
            const((IN_FEAT, D_MODEL)),                # wpx
            const((CLASS_SIZE, D_MODEL)),             # wplb (label rows + bias)
            const((N_RES, D_MODEL, D_MODEL)),         # wl
            const((N_RES, 1, D_MODEL)),               # bl
            const((D_MODEL, OUT_PAD)),                # wo
            const((1, OUT_PAD)),                      # bo
        ],
        out_specs=tiled((tile_b, OUT_PAD)),
        out_shape=jax.ShapeDtypeStruct((bp_rows, OUT_PAD), jnp.bfloat16),
        compiler_params=pltpu.CompilerParams(
            dimension_semantics=("parallel",)),       # megacore sharding on v7x
        cost_estimate=cost,
    )(xf, lab, params["wpx"], params["wplb"], params["wl"], params["bl"],
      params["wo"], params["bo"])

    out = out_pad[:B, :OUTPUT_DIM].astype(jnp.float32)           # (B, 3)
    return out[:, 0], out[:, 1], out[:, 2]


def _reference_forward(x, label, params):
    """Pure-JAX reference mirroring the kernel's bf16/f32 numeric recipe."""
    B = x.shape[0]
    xf = x.reshape(B, IN_FEAT).astype(jnp.bfloat16)

    def bdot(a_bf16, w_bf16):
        return jnp.dot(a_bf16.astype(jnp.float32), w_bf16.astype(jnp.float32))

    h = jnp.maximum(bdot(xf, params["wpx"]) + params["wplb"][label], 0.0)
    if BF16_CARRY:
        h = h.astype(jnp.bfloat16)
        bl = params["bl"].astype(jnp.bfloat16)
        for i in range(N_RES):
            d = bdot(h, params["wl"][i])
            h = jnp.maximum(d.astype(jnp.bfloat16) + h + bl[i, 0], 0)
    else:
        for i in range(N_RES):
            d = bdot(h.astype(jnp.bfloat16), params["wl"][i])
            h = jnp.maximum(d + h + params["bl"][i, 0], 0.0)
        h = h.astype(jnp.bfloat16)
    out = jnp.maximum(bdot(h, params["wo"]) + params["bo"][0], 0.0)
    out = out.astype(jnp.bfloat16).astype(jnp.float32)
    return out[:, 0], out[:, 1], out[:, 2]


if __name__ == "__main__":
    key = jax.random.PRNGKey(0)
    k_param, k_x, k_lab = jax.random.split(key, 3)

    params = init_params(k_param)

    # B=2 exercises the small-batch grid=1 path; B=300 exercises the tiled,
    # padded, multi-grid-step (megacore) path.
    for B in (2, 300):
        kx = jax.random.fold_in(k_x, B)
        kl = jax.random.fold_in(k_lab, B)
        x = jax.random.normal(kx, (B, SEQ_LEN, FEAT), jnp.float32)
        label = jax.random.randint(kl, (B,), 0, CLASS_SIZE, jnp.int32)

        weight, off1, off2 = mlp_2_class_resnet_forward(x, label, params)
        jax.block_until_ready((weight, off1, off2))

        rw, r1, r2 = _reference_forward(x, label, params)
        assert jnp.allclose(weight, rw, atol=2e-2, rtol=2e-2), (B, weight, rw)
        assert jnp.allclose(off1, r1, atol=2e-2, rtol=2e-2), (B, off1, r1)
        assert jnp.allclose(off2, r2, atol=2e-2, rtol=2e-2), (B, off2, r2)

    print("KERNEL_OK")
</pallas_src>

<mosaic_0001>
module attributes {stable_mosaic.version = 11 : i64} {
  func.func @mlp_kernel(%arg0: i32, %arg1: memref<16x200xbf16, #tpu.memory_space<vmem>>, %arg2: memref<16x1xi32, #tpu.memory_space<vmem>>, %arg3: memref<200x256xbf16, #tpu.memory_space<vmem>>, %arg4: memref<2x256xf32, #tpu.memory_space<vmem>>, %arg5: memref<7x256x256xbf16, #tpu.memory_space<vmem>>, %arg6: memref<7x1x256xf32, #tpu.memory_space<vmem>>, %arg7: memref<256x128xbf16, #tpu.memory_space<vmem>>, %arg8: memref<1x128xf32, #tpu.memory_space<vmem>>, %arg9: memref<16x128xbf16, #tpu.memory_space<vmem>>) attributes {dimension_semantics = [#tpu.dimension_semantics<parallel>], iteration_bounds = array<i64: 1>, scalar_prefetch = 0 : i64, scratch_operands = 0 : i64, tpu.core_type = #tpu.core_type<tc>, window_params = [{transform_indices = @transform_0, window_bounds = array<i64: 16, 200>}, {transform_indices = @transform_1, window_bounds = array<i64: 16, 1>}, {pipeline_mode = #tpu.pipeline_mode<synchronous>, transform_indices = @transform_2, window_bounds = array<i64: 200, 256>}, {pipeline_mode = #tpu.pipeline_mode<synchronous>, transform_indices = @transform_3, window_bounds = array<i64: 2, 256>}, {pipeline_mode = #tpu.pipeline_mode<synchronous>, transform_indices = @transform_4, window_bounds = array<i64: 7, 256, 256>}, {pipeline_mode = #tpu.pipeline_mode<synchronous>, transform_indices = @transform_5, window_bounds = array<i64: 7, 1, 256>}, {pipeline_mode = #tpu.pipeline_mode<synchronous>, transform_indices = @transform_6, window_bounds = array<i64: 256, 128>}, {pipeline_mode = #tpu.pipeline_mode<synchronous>, transform_indices = @transform_7, window_bounds = array<i64: 1, 128>}, {transform_indices = @transform_8, window_bounds = array<i64: 16, 128>}]} {
    %c0 = arith.constant 0 : index
    %c0_0 = arith.constant 0 : index
    %0 = vector.load %arg1[%c0, %c0_0] : memref<16x200xbf16, #tpu.memory_space<vmem>>, vector<16x200xbf16>
    %c0_1 = arith.constant 0 : index
    %c0_2 = arith.constant 0 : index
    %1 = vector.load %arg3[%c0_1, %c0_2] : memref<200x256xbf16, #tpu.memory_space<vmem>>, vector<200x256xbf16>
    %cst = arith.constant dense<0.000000e+00> : vector<16x256xf32>
    %2 = tpu.matmul %0, %1, %cst {dimension_numbers = #tpu.dot_dimension_numbers<[1], [0], [0], [1], [0, 0, 1, 1], [], []>} : vector<16x200xbf16>, vector<200x256xbf16>, vector<16x256xf32> -> vector<16x256xf32>
    %c0_3 = arith.constant 0 : index
    %c0_4 = arith.constant 0 : index
    %3 = vector.load %arg2[%c0_3, %c0_4] : memref<16x1xi32, #tpu.memory_space<vmem>>, vector<16x1xi32>
    %c0_i32 = arith.constant 0 : i32
    %4 = vector.broadcast %c0_i32 : i32 to vector<16x1xi32>
    %5 = arith.cmpi eq, %3, %4 : vector<16x1xi32>
    %c0_5 = arith.constant 0 : index
    %c0_6 = arith.constant 0 : index
    %6 = vector.load %arg4[%c0_5, %c0_6] : memref<2x256xf32, #tpu.memory_space<vmem>>, vector<1x256xf32>
    %c1 = arith.constant 1 : index
    %c0_7 = arith.constant 0 : index
    %7 = vector.load %arg4[%c1, %c0_7] : memref<2x256xf32, #tpu.memory_space<vmem>>, vector<1x256xf32>
    %8 = vector.shape_cast %5 : vector<16x1xi1> to vector<16x1xi1>
    %9 = vector.broadcast %8 : vector<16x1xi1> to vector<16x256xi1>
    %10 = vector.shape_cast %6 : vector<1x256xf32> to vector<1x256xf32>
    %11 = vector.broadcast %10 : vector<1x256xf32> to vector<16x256xf32>
    %12 = vector.shape_cast %7 : vector<1x256xf32> to vector<1x256xf32>
    %13 = vector.broadcast %12 : vector<1x256xf32> to vector<16x256xf32>
    %14 = arith.select %9, %11, %13 : vector<16x256xi1>, vector<16x256xf32>
    %15 = arith.addf %2, %14 : vector<16x256xf32>
    %cst_8 = arith.constant 0.000000e+00 : f32
    %16 = vector.broadcast %cst_8 : f32 to vector<16x256xf32>
    %17 = arith.maximumf %15, %16 : vector<16x256xf32>
    %18 = arith.truncf %17 : vector<16x256xf32> to vector<16x256xbf16>
    %c0_9 = arith.constant 0 : index
    %c0_10 = arith.constant 0 : index
    %c0_11 = arith.constant 0 : index
    %19 = vector.load %arg6[%c0_9, %c0_10, %c0_11] : memref<7x1x256xf32, #tpu.memory_space<vmem>>, vector<7x1x256xf32>
    %20 = arith.truncf %19 : vector<7x1x256xf32> to vector<7x1x256xbf16>
    %c0_12 = arith.constant 0 : index
    %c0_13 = arith.constant 0 : index
    %c0_14 = arith.constant 0 : index
    %21 = vector.load %arg5[%c0_12, %c0_13, %c0_14] : memref<7x256x256xbf16, #tpu.memory_space<vmem>>, vector<1x256x256xbf16>
    %22 = vector.shape_cast %21 : vector<1x256x256xbf16> to vector<256x256xbf16>
    %cst_15 = arith.constant dense<0.000000e+00> : vector<16x256xf32>
    %23 = tpu.matmul %18, %22, %cst_15 {dimension_numbers = #tpu.dot_dimension_numbers<[1], [0], [0], [1], [0, 0, 1, 1], [], []>} : vector<16x256xbf16>, vector<256x256xbf16>, vector<16x256xf32> -> vector<16x256xf32>
    %24 = arith.truncf %23 : vector<16x256xf32> to vector<16x256xbf16>
    %25 = arith.addf %24, %18 : vector<16x256xbf16>
    %26 = vector.extract_strided_slice %20 {offsets = [0, 0, 0], sizes = [1, 1, 256], strides = [1, 1, 1]} : vector<7x1x256xbf16> to vector<1x1x256xbf16>
    %27 = vector.shape_cast %26 : vector<1x1x256xbf16> to vector<1x256xbf16>
    %28 = vector.broadcast %27 : vector<1x256xbf16> to vector<16x256xbf16>
    %29 = arith.addf %25, %28 : vector<16x256xbf16>
    %cst_16 = arith.constant 0.000000e+00 : bf16
    %30 = vector.broadcast %cst_16 : bf16 to vector<16x256xbf16>
    %31 = arith.maximumf %29, %30 : vector<16x256xbf16>
    %c1_17 = arith.constant 1 : index
    %c0_18 = arith.constant 0 : index
    %c0_19 = arith.constant 0 : index
    %32 = vector.load %arg5[%c1_17, %c0_18, %c0_19] : memref<7x256x256xbf16, #tpu.memory_space<vmem>>, vector<1x256x256xbf16>
    %33 = vector.shape_cast %32 : vector<1x256x256xbf16> to vector<256x256xbf16>
    %cst_20 = arith.constant dense<0.000000e+00> : vector<16x256xf32>
    %34 = tpu.matmul %31, %33, %cst_20 {dimension_numbers = #tpu.dot_dimension_numbers<[1], [0], [0], [1], [0, 0, 1, 1], [], []>} : vector<16x256xbf16>, vector<256x256xbf16>, vector<16x256xf32> -> vector<16x256xf32>
    %35 = arith.truncf %34 : vector<16x256xf32> to vector<16x256xbf16>
    %36 = arith.addf %35, %31 : vector<16x256xbf16>
    %37 = vector.extract_strided_slice %20 {offsets = [1, 0, 0], sizes = [1, 1, 256], strides = [1, 1, 1]} : vector<7x1x256xbf16> to vector<1x1x256xbf16>
    %38 = vector.shape_cast %37 : vector<1x1x256xbf16> to vector<1x256xbf16>
    %39 = vector.broadcast %38 : vector<1x256xbf16> to vector<16x256xbf16>
    %40 = arith.addf %36, %39 : vector<16x256xbf16>
    %cst_21 = arith.constant 0.000000e+00 : bf16
    %41 = vector.broadcast %cst_21 : bf16 to vector<16x256xbf16>
    %42 = arith.maximumf %40, %41 : vector<16x256xbf16>
    %c2 = arith.constant 2 : index
    %c0_22 = arith.constant 0 : index
    %c0_23 = arith.constant 0 : index
    %43 = vector.load %arg5[%c2, %c0_22, %c0_23] : memref<7x256x256xbf16, #tpu.memory_space<vmem>>, vector<1x256x256xbf16>
    %44 = vector.shape_cast %43 : vector<1x256x256xbf16> to vector<256x256xbf16>
    %cst_24 = arith.constant dense<0.000000e+00> : vector<16x256xf32>
    %45 = tpu.matmul %42, %44, %cst_24 {dimension_numbers = #tpu.dot_dimension_numbers<[1], [0], [0], [1], [0, 0, 1, 1], [], []>} : vector<16x256xbf16>, vector<256x256xbf16>, vector<16x256xf32> -> vector<16x256xf32>
    %46 = arith.truncf %45 : vector<16x256xf32> to vector<16x256xbf16>
    %47 = arith.addf %46, %42 : vector<16x256xbf16>
    %48 = vector.extract_strided_slice %20 {offsets = [2, 0, 0], sizes = [1, 1, 256], strides = [1, 1, 1]} : vector<7x1x256xbf16> to vector<1x1x256xbf16>
    %49 = vector.shape_cast %48 : vector<1x1x256xbf16> to vector<1x256xbf16>
    %50 = vector.broadcast %49 : vector<1x256xbf16> to vector<16x256xbf16>
    %51 = arith.addf %47, %50 : vector<16x256xbf16>
    %cst_25 = arith.constant 0.000000e+00 : bf16
    %52 = vector.broadcast %cst_25 : bf16 to vector<16x256xbf16>
    %53 = arith.maximumf %51, %52 : vector<16x256xbf16>
    %c3 = arith.constant 3 : index
    %c0_26 = arith.constant 0 : index
    %c0_27 = arith.constant 0 : index
    %54 = vector.load %arg5[%c3, %c0_26, %c0_27] : memref<7x256x256xbf16, #tpu.memory_space<vmem>>, vector<1x256x256xbf16>
    %55 = vector.shape_cast %54 : vector<1x256x256xbf16> to vector<256x256xbf16>
    %cst_28 = arith.constant dense<0.000000e+00> : vector<16x256xf32>
    %56 = tpu.matmul %53, %55, %cst_28 {dimension_numbers = #tpu.dot_dimension_numbers<[1], [0], [0], [1], [0, 0, 1, 1], [], []>} : vector<16x256xbf16>, vector<256x256xbf16>, vector<16x256xf32> -> vector<16x256xf32>
    %57 = arith.truncf %56 : vector<16x256xf32> to vector<16x256xbf16>
    %58 = arith.addf %57, %53 : vector<16x256xbf16>
    %59 = vector.extract_strided_slice %20 {offsets = [3, 0, 0], sizes = [1, 1, 256], strides = [1, 1, 1]} : vector<7x1x256xbf16> to vector<1x1x256xbf16>
    %60 = vector.shape_cast %59 : vector<1x1x256xbf16> to vector<1x256xbf16>
    %61 = vector.broadcast %60 : vector<1x256xbf16> to vector<16x256xbf16>
    %62 = arith.addf %58, %61 : vector<16x256xbf16>
    %cst_29 = arith.constant 0.000000e+00 : bf16
    %63 = vector.broadcast %cst_29 : bf16 to vector<16x256xbf16>
    %64 = arith.maximumf %62, %63 : vector<16x256xbf16>
    %c4 = arith.constant 4 : index
    %c0_30 = arith.constant 0 : index
    %c0_31 = arith.constant 0 : index
    %65 = vector.load %arg5[%c4, %c0_30, %c0_31] : memref<7x256x256xbf16, #tpu.memory_space<vmem>>, vector<1x256x256xbf16>
    %66 = vector.shape_cast %65 : vector<1x256x256xbf16> to vector<256x256xbf16>
    %cst_32 = arith.constant dense<0.000000e+00> : vector<16x256xf32>
    %67 = tpu.matmul %64, %66, %cst_32 {dimension_numbers = #tpu.dot_dimension_numbers<[1], [0], [0], [1], [0, 0, 1, 1], [], []>} : vector<16x256xbf16>, vector<256x256xbf16>, vector<16x256xf32> -> vector<16x256xf32>
    %68 = arith.truncf %67 : vector<16x256xf32> to vector<16x256xbf16>
    %69 = arith.addf %68, %64 : vector<16x256xbf16>
    %70 = vector.extract_strided_slice %20 {offsets = [4, 0, 0], sizes = [1, 1, 256], strides = [1, 1, 1]} : vector<7x1x256xbf16> to vector<1x1x256xbf16>
    %71 = vector.shape_cast %70 : vector<1x1x256xbf16> to vector<1x256xbf16>
    %72 = vector.broadcast %71 : vector<1x256xbf16> to vector<16x256xbf16>
    %73 = arith.addf %69, %72 : vector<16x256xbf16>
    %cst_33 = arith.constant 0.000000e+00 : bf16
    %74 = vector.broadcast %cst_33 : bf16 to vector<16x256xbf16>
    %75 = arith.maximumf %73, %74 : vector<16x256xbf16>
    %c5 = arith.constant 5 : index
    %c0_34 = arith.constant 0 : index
    %c0_35 = arith.constant 0 : index
    %76 = vector.load %arg5[%c5, %c0_34, %c0_35] : memref<7x256x256xbf16, #tpu.memory_space<vmem>>, vector<1x256x256xbf16>
    %77 = vector.shape_cast %76 : vector<1x256x256xbf16> to vector<256x256xbf16>
    %cst_36 = arith.constant dense<0.000000e+00> : vector<16x256xf32>
    %78 = tpu.matmul %75, %77, %cst_36 {dimension_numbers = #tpu.dot_dimension_numbers<[1], [0], [0], [1], [0, 0, 1, 1], [], []>} : vector<16x256xbf16>, vector<256x256xbf16>, vector<16x256xf32> -> vector<16x256xf32>
    %79 = arith.truncf %78 : vector<16x256xf32> to vector<16x256xbf16>
    %80 = arith.addf %79, %75 : vector<16x256xbf16>
    %81 = vector.extract_strided_slice %20 {offsets = [5, 0, 0], sizes = [1, 1, 256], strides = [1, 1, 1]} : vector<7x1x256xbf16> to vector<1x1x256xbf16>
    %82 = vector.shape_cast %81 : vector<1x1x256xbf16> to vector<1x256xbf16>
    %83 = vector.broadcast %82 : vector<1x256xbf16> to vector<16x256xbf16>
    %84 = arith.addf %80, %83 : vector<16x256xbf16>
    %cst_37 = arith.constant 0.000000e+00 : bf16
    %85 = vector.broadcast %cst_37 : bf16 to vector<16x256xbf16>
    %86 = arith.maximumf %84, %85 : vector<16x256xbf16>
    %c6 = arith.constant 6 : index
    %c0_38 = arith.constant 0 : index
    %c0_39 = arith.constant 0 : index
    %87 = vector.load %arg5[%c6, %c0_38, %c0_39] : memref<7x256x256xbf16, #tpu.memory_space<vmem>>, vector<1x256x256xbf16>
    %88 = vector.shape_cast %87 : vector<1x256x256xbf16> to vector<256x256xbf16>
    %cst_40 = arith.constant dense<0.000000e+00> : vector<16x256xf32>
    %89 = tpu.matmul %86, %88, %cst_40 {dimension_numbers = #tpu.dot_dimension_numbers<[1], [0], [0], [1], [0, 0, 1, 1], [], []>} : vector<16x256xbf16>, vector<256x256xbf16>, vector<16x256xf32> -> vector<16x256xf32>
    %90 = arith.truncf %89 : vector<16x256xf32> to vector<16x256xbf16>
    %91 = arith.addf %90, %86 : vector<16x256xbf16>
    %92 = vector.extract_strided_slice %20 {offsets = [6, 0, 0], sizes = [1, 1, 256], strides = [1, 1, 1]} : vector<7x1x256xbf16> to vector<1x1x256xbf16>
    %93 = vector.shape_cast %92 : vector<1x1x256xbf16> to vector<1x256xbf16>
    %94 = vector.broadcast %93 : vector<1x256xbf16> to vector<16x256xbf16>
    %95 = arith.addf %91, %94 : vector<16x256xbf16>
    %cst_41 = arith.constant 0.000000e+00 : bf16
    %96 = vector.broadcast %cst_41 : bf16 to vector<16x256xbf16>
    %97 = arith.maximumf %95, %96 : vector<16x256xbf16>
    %c0_42 = arith.constant 0 : index
    %c0_43 = arith.constant 0 : index
    %98 = vector.load %arg7[%c0_42, %c0_43] : memref<256x128xbf16, #tpu.memory_space<vmem>>, vector<256x128xbf16>
    %cst_44 = arith.constant dense<0.000000e+00> : vector<16x128xf32>
    %99 = tpu.matmul %97, %98, %cst_44 {dimension_numbers = #tpu.dot_dimension_numbers<[1], [0], [0], [1], [0, 0, 1, 1], [], []>} : vector<16x256xbf16>, vector<256x128xbf16>, vector<16x128xf32> -> vector<16x128xf32>
    %c0_45 = arith.constant 0 : index
    %c0_46 = arith.constant 0 : index
    %100 = vector.load %arg8[%c0_45, %c0_46] : memref<1x128xf32, #tpu.memory_space<vmem>>, vector<1x128xf32>
    %101 = vector.broadcast %100 : vector<1x128xf32> to vector<16x128xf32>
    %102 = arith.addf %99, %101 : vector<16x128xf32>
    %cst_47 = arith.constant 0.000000e+00 : f32
    %103 = vector.broadcast %cst_47 : f32 to vector<16x128xf32>
    %104 = arith.maximumf %102, %103 : vector<16x128xf32>
    %105 = arith.truncf %104 : vector<16x128xf32> to vector<16x128xbf16>
    %c0_48 = arith.constant 0 : index
    %c0_49 = arith.constant 0 : index
    %106 = vector.load %arg9[%c0_48, %c0_49] : memref<16x128xbf16, #tpu.memory_space<vmem>>, vector<16x128xbf16>
    tpu.vector_store %arg9[%c0_48, %c0_49], %105 {strides = array<i32>} : memref<16x128xbf16, #tpu.memory_space<vmem>>, vector<16x128xbf16>,
    return
  }
  func.func @transform_0(%arg0: i32) -> (i32, i32) {
    %c0_i32 = arith.constant 0 : i32
    %c0_i32_0 = arith.constant 0 : i32
    return %arg0, %c0_i32 : i32, i32
  }
  func.func @transform_1(%arg0: i32) -> (i32, i32) {
    %c0_i32 = arith.constant 0 : i32
    %c0_i32_0 = arith.constant 0 : i32
    return %arg0, %c0_i32 : i32, i32
  }
  func.func @transform_2(%arg0: i32) -> (i32, i32) {
    %c0_i32 = arith.constant 0 : i32
    %c0_i32_0 = arith.constant 0 : i32
    %c0_i32_1 = arith.constant 0 : i32
    return %c0_i32, %c0_i32_0 : i32, i32
  }
  func.func @transform_3(%arg0: i32) -> (i32, i32) {
    %c0_i32 = arith.constant 0 : i32
    %c0_i32_0 = arith.constant 0 : i32
    %c0_i32_1 = arith.constant 0 : i32
    return %c0_i32, %c0_i32_0 : i32, i32
  }
  func.func @transform_4(%arg0: i32) -> (i32, i32, i32) {
    %c0_i32 = arith.constant 0 : i32
    %c0_i32_0 = arith.constant 0 : i32
    %c0_i32_1 = arith.constant 0 : i32
    %c0_i32_2 = arith.constant 0 : i32
    return %c0_i32, %c0_i32_0, %c0_i32_1 : i32, i32, i32
  }
  func.func @transform_5(%arg0: i32) -> (i32, i32, i32) {
    %c0_i32 = arith.constant 0 : i32
    %c0_i32_0 = arith.constant 0 : i32
    %c0_i32_1 = arith.constant 0 : i32
    %c0_i32_2 = arith.constant 0 : i32
    return %c0_i32, %c0_i32_0, %c0_i32_1 : i32, i32, i32
  }
  func.func @transform_6(%arg0: i32) -> (i32, i32) {
    %c0_i32 = arith.constant 0 : i32
    %c0_i32_0 = arith.constant 0 : i32
    %c0_i32_1 = arith.constant 0 : i32
    return %c0_i32, %c0_i32_0 : i32, i32
  }
  func.func @transform_7(%arg0: i32) -> (i32, i32) {
    %c0_i32 = arith.constant 0 : i32
    %c0_i32_0 = arith.constant 0 : i32
    %c0_i32_1 = arith.constant 0 : i32
    return %c0_i32, %c0_i32_0 : i32, i32
  }
  func.func @transform_8(%arg0: i32) -> (i32, i32) {
    %c0_i32 = arith.constant 0 : i32
    %c0_i32_0 = arith.constant 0 : i32
    return %arg0, %c0_i32 : i32, i32
  }
}

</mosaic_0001>

<llo_original>
// kernel: mlp_2_class_resnet_forward.1
$region0: #{mlp_2_class_resnet_forward.1}
  #allocation0 [shape = 'u32[]', space=smem, size = 0x4, offset = 0x4, fixed_abs, tag = 'smem constant byte address 0x4 - core index']
  #allocation1 [shape = 'u32[144,128]{1,0:T(1,128)}', space=vmem, size = 0x12000, scoped, tag = 'internal scratch']
  %s0 = inlined_call_operand.vmem [shape: bf16[16,200], index: 0, kind: input, shape index: {}]
  %s1 = inlined_call_operand.vmem [shape: s32[16,1], index: 1, kind: input, shape index: {}]
  %s2 = inlined_call_operand.hbm [shape: bf16[200,256], index: 2, kind: input, shape index: {}]
  %s3 = inlined_call_operand.vmem [shape: f32[2,256], index: 3, kind: input, shape index: {}]
  %s4 = inlined_call_operand.hbm [shape: bf16[7,256,256], index: 4, kind: input, shape index: {}]
  %s5 = inlined_call_operand.vmem [shape: f32[7,1,256], index: 5, kind: input, shape index: {}]
  %s6 = inlined_call_operand.hbm [shape: bf16[256,128], index: 6, kind: input, shape index: {}]
  %s7 = inlined_call_operand.vmem [shape: f32[1,128], index: 7, kind: input, shape index: {}]
  %s8 = inlined_call_operand.vmem [shape: bf16[16,128], index: 8, kind: output, shape index: {}]
  %s9 = sld [smem:[#allocation0]]
  $region54: #{mlp_2_class_resnet_forward.1} parent=0
    _
  %s11 = ssub.s32 1, %s9
  %s12 = scalar_select 0, %s11, %s9
  $region1: #{mlp_2_class_resnet_forward.1} parent=0
    #allocation2 [shape = 'u8[102400]{0}', space=vmem, size = 0x19000, scoped, tag = 'input window, operand 2, single buffered']
    #allocation3 [shape = 's32[1]{0}', space=sflag, size = 0x4, scoped, tag = 'scoped memory for mlp_2_class_resnet_forward.1']
    #allocation4 [shape = 'u8[917504]{0}', space=vmem, size = 0xe0000, scoped, tag = 'input window, operand 4, single buffered']
    #allocation5 [shape = 's32[1]{0}', space=sflag, size = 0x4, scoped, tag = 'scoped memory for mlp_2_class_resnet_forward.1']
    #allocation6 [shape = 'u8[65536]{0}', space=vmem, size = 0x10000, scoped, tag = 'input window, operand 6, single buffered']
    %13 = vsyncpa [#allocation3], 0
    %14 = vsyncpa [#allocation5], 0
    // Predicated region
    $region2: #{mlp_2_class_resnet_forward.1} parent=1 // pred_check
      _
    $region3: #{mlp_2_class_resnet_forward.1} parent=1 // pred_check_branch
      %16 = sbr.rel (0) target = $region5
    $region4: #{mlp_2_class_resnet_forward.1} parent=1 // pred_region
      _
    $region5: #{mlp_2_class_resnet_forward.1} parent=1 // pred_fallthru
      _
    // Predicated region
    $region6: #{mlp_2_class_resnet_forward.1} parent=1 // pred_check
      _
    $region7: #{mlp_2_class_resnet_forward.1} parent=1 // pred_check_branch
      %18 = sbr.rel (0) target = $region9
    $region8: #{mlp_2_class_resnet_forward.1} parent=1 // pred_region
      _
    $region9: #{mlp_2_class_resnet_forward.1} parent=1 // pred_fallthru
      _
    // Predicated region
    $region10: #{mlp_2_class_resnet_forward.1} parent=1 // pred_check
      _
    $region11: #{mlp_2_class_resnet_forward.1} parent=1 // pred_check_branch
      %20 = sbr.rel (0) target = $region13
    $region12: #{mlp_2_class_resnet_forward.1} parent=1 // pred_region
      %s22 = ssub.s32 3200, 3200
      %23 = vsyncadd [#allocation3], %s22
      %s24 = sshll.u32 [#allocation2], 4
      %s25 = int_to_ptr.vmem [resolvable:$true] %s24
      %30 = dma.hbm_to_vmem [thread:$0]  %s2, 3200, %s25, [#allocation3], 128, 128, 8
    $region13: #{mlp_2_class_resnet_forward.1} parent=1 // pred_fallthru
      _
    // Predicated region
    $region14: #{mlp_2_class_resnet_forward.1} parent=1 // pred_check
      _
    $region15: #{mlp_2_class_resnet_forward.1} parent=1 // pred_check_branch
      %32 = sbr.rel (0) target = $region17
    $region16: #{mlp_2_class_resnet_forward.1} parent=1 // pred_region
      _
    $region17: #{mlp_2_class_resnet_forward.1} parent=1 // pred_fallthru
      _
    // Predicated region
    $region18: #{mlp_2_class_resnet_forward.1} parent=1 // pred_check
      _
    $region19: #{mlp_2_class_resnet_forward.1} parent=1 // pred_check_branch
      %34 = sbr.rel (0) target = $region21
    $region20: #{mlp_2_class_resnet_forward.1} parent=1 // pred_region
      %s36 = ssub.s32 28672, 28672
      %37 = vsyncadd [#allocation5], %s36
      %s38 = sshll.u32 [#allocation4], 4
      %s39 = int_to_ptr.vmem [resolvable:$true] %s38
      %44 = dma.hbm_to_vmem [thread:$0]  %s4, 28672, %s39, [#allocation5], 128, 128, 8
    $region21: #{mlp_2_class_resnet_forward.1} parent=1 // pred_fallthru
      _
    // Predicated region
    $region22: #{mlp_2_class_resnet_forward.1} parent=1 // pred_check
      _
    $region23: #{mlp_2_class_resnet_forward.1} parent=1 // pred_check_branch
      %46 = sbr.rel (0) target = $region25
    $region24: #{mlp_2_class_resnet_forward.1} parent=1 // pred_region
      _
    $region25: #{mlp_2_class_resnet_forward.1} parent=1 // pred_fallthru
      _
    // Predicated region
    $region26: #{mlp_2_class_resnet_forward.1} parent=1 // pred_check
      _
    $region27: #{mlp_2_class_resnet_forward.1} parent=1 // pred_check_branch
      %48 = sbr.rel (0) target = $region29
    $region28: #{mlp_2_class_resnet_forward.1} parent=1 // pred_region
      %s50 = ssub.s32 2048, 2048
      %51 = vsyncadd [#allocation5], %s50
      %s52 = sshll.u32 [#allocation6], 4
      %s53 = int_to_ptr.vmem [resolvable:$true] %s52
      %58 = dma.hbm_to_vmem [thread:$0]  %s6, 2048, %s53, [#allocation5], 64, 64, 4
    $region29: #{mlp_2_class_resnet_forward.1} parent=1 // pred_fallthru
      _
    // Predicated region
    $region30: #{mlp_2_class_resnet_forward.1} parent=1 // pred_check
      _
    $region31: #{mlp_2_class_resnet_forward.1} parent=1 // pred_check_branch
      %60 = sbr.rel (0) target = $region33
    $region32: #{mlp_2_class_resnet_forward.1} parent=1 // pred_region
      _
    $region33: #{mlp_2_class_resnet_forward.1} parent=1 // pred_fallthru
      _
    // Predicated region
    $region34: #{mlp_2_class_resnet_forward.1} parent=1 // pred_check
      _
    $region35: #{mlp_2_class_resnet_forward.1} parent=1 // pred_check_branch
      %62 = sbr.rel (0) target = $region37
    $region36: #{mlp_2_class_resnet_forward.1} parent=1 // pred_region
      %63 = dma.done [#allocation3], 3200
    $region37: #{mlp_2_class_resnet_forward.1} parent=1 // pred_fallthru
      _
    // Predicated region
    $region38: #{mlp_2_class_resnet_forward.1} parent=1 // pred_check
      _
    $region39: #{mlp_2_class_resnet_forward.1} parent=1 // pred_check_branch
      %65 = sbr.rel (0) target = $region41
    $region40: #{mlp_2_class_resnet_forward.1} parent=1 // pred_region
      %66 = dma.done [#allocation5], 28672
    $region41: #{mlp_2_class_resnet_forward.1} parent=1 // pred_fallthru
      _
    // Predicated region
    $region42: #{mlp_2_class_resnet_forward.1} parent=1 // pred_check
      _
    $region43: #{mlp_2_class_resnet_forward.1} parent=1 // pred_check_branch
      %68 = sbr.rel (0) target = $region45
    $region44: #{mlp_2_class_resnet_forward.1} parent=1 // pred_region
      %69 = dma.done [#allocation5], 2048
    $region45: #{mlp_2_class_resnet_forward.1} parent=1 // pred_fallthru
      _
    %v71 = vld [vmem:[%s0] sm:$0xff]
    %v72 = vld [vmem:[%s0 + $0x8] sm:$0xff]
    %v73 = vld [vmem:[#allocation2] sm:$0xff]
    %v74 = vld [vmem:[#allocation2 + $0x8] sm:$0xff]
    %v75 = vld [vmem:[#allocation2 + $0x10] sm:$0xff]
    %v76 = vld [vmem:[#allocation2 + $0x18] sm:$0xff]
    %v77 = vld [vmem:[#allocation2 + $0x20] sm:$0xff]
    %v78 = vld [vmem:[#allocation2 + $0x28] sm:$0xff]
    %v79 = vld [vmem:[#allocation2 + $0x30] sm:$0xff]
    %v80 = vld [vmem:[#allocation2 + $0x38] sm:$0xff]
    %v81 = vld [vmem:[#allocation2 + $0x40] sm:$0xff]
    %v82 = vld [vmem:[#allocation2 + $0x48] sm:$0xff]
    %v83 = vld [vmem:[#allocation2 + $0x50] sm:$0xff]
    %v84 = vld [vmem:[#allocation2 + $0x58] sm:$0xff]
    %v85 = vld [vmem:[#allocation2 + $0x60] sm:$0xff]
    %v86 = vld [vmem:[#allocation2 + $0x68] sm:$0xff]
    %v87 = vld [vmem:[#allocation2 + $0x70] sm:$0xff]
    %v88 = vld [vmem:[#allocation2 + $0x78] sm:$0xff]
    %v89 = vld [vmem:[#allocation2 + $0x80] sm:$0xff]
    %v90 = vld [vmem:[#allocation2 + $0x88] sm:$0xff]
    %v91 = vld [vmem:[#allocation2 + $0x90] sm:$0xff]
    %v92 = vld [vmem:[#allocation2 + $0x98] sm:$0xff]
    %v93 = vld [vmem:[#allocation2 + $0xa0] sm:$0xff]
    %v94 = vld [vmem:[#allocation2 + $0xa8] sm:$0xff]
    %v95 = vld [vmem:[#allocation2 + $0xb0] sm:$0xff]
    %v96 = vld [vmem:[#allocation2 + $0xb8] sm:$0xff]
    %v97 = vld [vmem:[#allocation2 + $0xc0] sm:$0xff]
    %v98 = vld [vmem:[%s1] sm:$0xff]
    %v99 = vld [vmem:[%s1 + $0x8] sm:$0xff]
    %vm100 = vcmp.eq.s32.totalorder %v98, 0
    %vm101 = vcmp.eq.s32.totalorder %v99, 0
    %v102 = vld [vmem:[%s3] ss:$2 sm:$0x3]
    %s103 = scalar_lea.vmem %s3, 1
    %v104 = vld [vmem:[%s103] ss:$2 sm:$0x3]
    %v105 = vsel %vm100, 1, 0
    %v106 = vsel %vm101, 1, 0
    %107 = vset.pattern.permute.xlu0 0
    %108 = vperm.xlu0 %107, %v105
    %v109 = vpop.permute.xlu0 %108
    %110 = vset.pattern.permute.xlu0 0
    %111 = vperm.xlu0 %110, %v106
    %v112 = vpop.permute.xlu0 %111
    %vm113 = vcmp.eq.s32.totalorder %v109, 1
    %vm114 = vcmp.eq.s32.totalorder %v112, 1
    %v116 = vlaneseq
    %v117 = vshrl.u32 %v116, 7
    %v118 = vsub.s32 0, %v117
    %v119 = vrot.slane %v102, %v118
    %v120 = vlaneseq
    %v121 = vshrl.u32 %v120, 7
    %v122 = vsub.s32 1, %v121
    %v123 = vrot.slane %v102, %v122
    %v127 = vlaneseq
    %v128 = vshrl.u32 %v127, 7
    %v129 = vsub.s32 0, %v128
    %v130 = vrot.slane %v104, %v129
    %v131 = vlaneseq
    %v132 = vshrl.u32 %v131, 7
    %v133 = vsub.s32 1, %v132
    %v134 = vrot.slane %v104, %v133
    %v137 = vsel %vm113, %v119, %v130
    %v138 = vsel %vm113, %v123, %v134
    %v139 = vsel %vm114, %v119, %v130
    %v140 = vsel %vm114, %v123, %v134
    %v143 = vunpack.c.l.b16 %v71
    %v144 = vunpack.c.h.b16 %v71
    %v145 = vunpack.c.l.b16 %v72
    %v146 = vunpack.c.h.b16 %v72
    %v147 = vpack.c.b16 %v145, %v143
    %v148 = vpack.c.b16 %v146, %v144
    %v175 = vunpack.c.l.b16 %v73
    %v176 = vunpack.c.h.b16 %v73
    %v177 = vunpack.c.l.b16 %v74
    %v178 = vunpack.c.h.b16 %v74
    %v179 = vunpack.c.l.b16 %v75
    %v180 = vunpack.c.h.b16 %v75
    %v181 = vunpack.c.l.b16 %v76
    %v182 = vunpack.c.h.b16 %v76
    %v183 = vunpack.c.l.b16 %v77
    %v184 = vunpack.c.h.b16 %v77
    %v185 = vunpack.c.l.b16 %v78
    %v186 = vunpack.c.h.b16 %v78
    %v187 = vunpack.c.l.b16 %v79
    %v188 = vunpack.c.h.b16 %v79
    %v189 = vunpack.c.l.b16 %v80
    %v190 = vunpack.c.h.b16 %v80
    %v191 = vunpack.c.l.b16 %v81
    %v192 = vunpack.c.h.b16 %v81
    %v193 = vunpack.c.l.b16 %v82
    %v194 = vunpack.c.h.b16 %v82
    %v195 = vunpack.c.l.b16 %v83
    %v196 = vunpack.c.h.b16 %v83
    %v197 = vunpack.c.l.b16 %v84
    %v198 = vunpack.c.h.b16 %v84
    %v199 = vunpack.c.l.b16 %v85
    %v200 = vunpack.c.h.b16 %v85
    %v201 = vunpack.c.l.b16 %v86
    %v202 = vunpack.c.h.b16 %v86
    %v203 = vunpack.c.l.b16 %v87
    %v204 = vunpack.c.h.b16 %v87
    %v205 = vunpack.c.l.b16 %v88
    %v206 = vunpack.c.h.b16 %v88
    %v207 = vunpack.c.l.b16 %v89
    %v208 = vunpack.c.h.b16 %v89
    %v209 = vunpack.c.l.b16 %v90
    %v210 = vunpack.c.h.b16 %v90
    %v211 = vunpack.c.l.b16 %v91
    %v212 = vunpack.c.h.b16 %v91
    %v213 = vunpack.c.l.b16 %v92
    %v214 = vunpack.c.h.b16 %v92
    %v215 = vunpack.c.l.b16 %v93
    %v216 = vunpack.c.h.b16 %v93
    %v217 = vunpack.c.l.b16 %v94
    %v218 = vunpack.c.h.b16 %v94
    %v219 = vunpack.c.l.b16 %v95
    %v220 = vunpack.c.h.b16 %v95
    %v221 = vunpack.c.l.b16 %v96
    %v222 = vunpack.c.h.b16 %v96
    %v223 = vunpack.c.l.b16 %v97
    %v224 = vunpack.c.h.b16 %v97
    %v225 = vpack.c.b16 %v177, %v175
    %v226 = vpack.c.b16 %v178, %v176
    %v227 = vpack.c.b16 %v181, %v179
    %v228 = vpack.c.b16 %v182, %v180
    %v229 = vpack.c.b16 %v185, %v183
    %v230 = vpack.c.b16 %v186, %v184
    %v231 = vpack.c.b16 %v189, %v187
    %v232 = vpack.c.b16 %v190, %v188
    %v233 = vpack.c.b16 %v193, %v191
    %v234 = vpack.c.b16 %v194, %v192
    %v235 = vpack.c.b16 %v197, %v195
    %v236 = vpack.c.b16 %v198, %v196
    %v237 = vpack.c.b16 %v201, %v199
    %v238 = vpack.c.b16 %v202, %v200
    %v239 = vpack.c.b16 %v205, %v203
    %v240 = vpack.c.b16 %v206, %v204
    %v241 = vpack.c.b16 %v209, %v207
    %v242 = vpack.c.b16 %v210, %v208
    %v243 = vpack.c.b16 %v213, %v211
    %v244 = vpack.c.b16 %v214, %v212
    %v245 = vpack.c.b16 %v217, %v215
    %v246 = vpack.c.b16 %v218, %v216
    %v247 = vpack.c.b16 %v221, %v219
    %v248 = vpack.c.b16 %v222, %v220
    %v249 = vpack.c.b16 %v223, %v223
    %v250 = vpack.c.b16 %v224, %v224
    %vm275 = vcmask 588800
    %v277 = vsel %vm275, %v148, 0
    %vm279 = vcmask 1043456
    %v281 = vsel %vm279, %v249, 0
    %v284 = vsel %vm279, %v250, 0
    %286 = vmatprep.subr.bf16.mxu0 %v240
    %287 = vmatpush1.bf16.msra.mxu0 %v239
    %288 = vmatprep.subr.bf16.mxu0 %v238
    %289 = vmatpush1.bf16.msra.mxu0 %v237
    %290 = vmatprep.subr.bf16.mxu0 %v236
    %291 = vmatpush1.bf16.msra.mxu0 %v235
    %292 = vmatprep.subr.bf16.mxu0 %v234
    %293 = vmatpush1.bf16.msra.mxu0 %v233
    %294 = vmatprep.subr.bf16.mxu0 %v232
    %295 = vmatpush1.bf16.msra.mxu0 %v231
    %296 = vmatprep.subr.bf16.mxu0 %v230
    %297 = vmatpush1.bf16.msra.mxu0 %v229
    %298 = vmatprep.subr.bf16.mxu0 %v228
    %299 = vmatpush1.bf16.msra.mxu0 %v227
    %300 = vmatprep.subr.bf16.mxu0 %v226
    %301 = vmatpush1.bf16.msra.mxu0 %v225
    %302 = vmatprep.subr.bf16.mxu0 0
    %303 = vmatpush2.bf16.msra.mxu0 0
    %304 = vmatprep.subr.bf16.mxu0 0
    %305 = vmatpush2.bf16.msra.mxu0 0
    %306 = vmatprep.subr.bf16.mxu0 0
    %307 = vmatpush2.bf16.msra.mxu0 0
    %308 = vmatprep.subr.bf16.mxu0 %v284
    %309 = vmatpush2.bf16.msra.mxu0 %v281
    %310 = vmatprep.subr.bf16.mxu0 %v248
    %311 = vmatpush2.bf16.msra.mxu0 %v247
    %312 = vmatprep.subr.bf16.mxu0 %v246
    %313 = vmatpush2.bf16.msra.mxu0 %v245
    %314 = vmatprep.subr.bf16.mxu0 %v244
    %315 = vmatpush2.bf16.msra.mxu0 %v243
    %316 = vmatprep.subr.bf16.mxu0 %v242
    %317 = vmatpush2.bf16.msra.mxu0 %v241
    %318 = vmatprep.mubr.bf16.mxu0 %v277
    %319 = vmatmul.mubr.bf16.gmra.mxu0 %v147
    %v320 = vpop.f32.mrf.mxu0
    %v321 = vadd.f32 %v137, %v320
    %v322 = vpop.f32.mrf.mxu0
    %v323 = vadd.f32 %v138, %v322
    %v324 = vpop.f32.mrf.mxu0
    %v325 = vadd.f32 %v139, %v324
    %v326 = vpop.f32.mrf.mxu0
    %v327 = vadd.f32 %v140, %v326
    %328 = vdwg.mxu0
    %v329 = vmax.f32 %v321, 0.0
    %v330 = vmax.f32 %v323, 0.0
    %v331 = vmax.f32 %v325, 0.0
    %v332 = vmax.f32 %v327, 0.0
    %v333 = vpack.c.bf16 %v331, %v329
    %v334 = vpack.c.bf16 %v332, %v330
    %v335 = vld [vmem:[%s5] sm:$0x3]
    %v336 = vld [vmem:[%s5 + $0x2] sm:$0x3]
    %v337 = vld [vmem:[%s5 + $0x4] sm:$0x3]
    %v338 = vld [vmem:[%s5 + $0x6] sm:$0x3]
    %v339 = vld [vmem:[%s5 + $0x8] sm:$0x3]
    %v340 = vld [vmem:[%s5 + $0xa] sm:$0x3]
    %v341 = vld [vmem:[%s5 + $0xc] sm:$0x3]
    %v349 = vlaneseq
    %v350 = vshrl.u32 %v349, 7
    %v351 = vsub.s32 0, %v350
    %v352 = vrot.slane %v335, %v351
    %v353 = vlaneseq
    %v354 = vshrl.u32 %v353, 7
    %v355 = vsub.s32 1, %v354
    %v356 = vrot.slane %v335, %v355
    %v357 = vlaneseq
    %v358 = vshrl.u32 %v357, 7
    %v359 = vsub.s32 0, %v358
    %v360 = vrot.slane %v336, %v359
    %v361 = vlaneseq
    %v362 = vshrl.u32 %v361, 7
    %v363 = vsub.s32 1, %v362
    %v364 = vrot.slane %v336, %v363
    %v365 = vlaneseq
    %v366 = vshrl.u32 %v365, 7
    %v367 = vsub.s32 0, %v366
    %v368 = vrot.slane %v337, %v367
    %v369 = vlaneseq
    %v370 = vshrl.u32 %v369, 7
    %v371 = vsub.s32 1, %v370
    %v372 = vrot.slane %v337, %v371
    %v373 = vlaneseq
    %v374 = vshrl.u32 %v373, 7
    %v375 = vsub.s32 0, %v374
    %v376 = vrot.slane %v338, %v375
    %v377 = vlaneseq
    %v378 = vshrl.u32 %v377, 7
    %v379 = vsub.s32 1, %v378
    %v380 = vrot.slane %v338, %v379
    %v381 = vlaneseq
    %v382 = vshrl.u32 %v381, 7
    %v383 = vsub.s32 0, %v382
    %v384 = vrot.slane %v339, %v383
    %v385 = vlaneseq
    %v386 = vshrl.u32 %v385, 7
    %v387 = vsub.s32 1, %v386
    %v388 = vrot.slane %v339, %v387
    %v389 = vlaneseq
    %v390 = vshrl.u32 %v389, 7
    %v391 = vsub.s32 0, %v390
    %v392 = vrot.slane %v340, %v391
    %v393 = vlaneseq
    %v394 = vshrl.u32 %v393, 7
    %v395 = vsub.s32 1, %v394
    %v396 = vrot.slane %v340, %v395
    %v397 = vlaneseq
    %v398 = vshrl.u32 %v397, 7
    %v399 = vsub.s32 0, %v398
    %v400 = vrot.slane %v341, %v399
    %v401 = vlaneseq
    %v402 = vshrl.u32 %v401, 7
    %v403 = vsub.s32 1, %v402
    %v404 = vrot.slane %v341, %v403
    %v419 = vpack.c.bf16 %v352, %v352
    %v420 = vpack.c.bf16 %v356, %v356
    %v421 = vpack.c.bf16 %v360, %v360
    %v422 = vpack.c.bf16 %v364, %v364
    %v423 = vpack.c.bf16 %v368, %v368
    %v424 = vpack.c.bf16 %v372, %v372
    %v425 = vpack.c.bf16 %v376, %v376
    %v426 = vpack.c.bf16 %v380, %v380
    %v427 = vpack.c.bf16 %v384, %v384
    %v428 = vpack.c.bf16 %v388, %v388
    %v429 = vpack.c.bf16 %v392, %v392
    %v430 = vpack.c.bf16 %v396, %v396
    %v431 = vpack.c.bf16 %v400, %v400
    %v432 = vpack.c.bf16 %v404, %v404
    %v433 = vld [vmem:[#allocation4] sm:$0xff]
    %v434 = vld [vmem:[#allocation4 + $0x8] sm:$0xff]
    %v435 = vld [vmem:[#allocation4 + $0x10] sm:$0xff]
    %v436 = vld [vmem:[#allocation4 + $0x18] sm:$0xff]
    %v437 = vld [vmem:[#allocation4 + $0x20] sm:$0xff]
    %v438 = vld [vmem:[#allocation4 + $0x28] sm:$0xff]
    %v439 = vld [vmem:[#allocation4 + $0x30] sm:$0xff]
    %v440 = vld [vmem:[#allocation4 + $0x38] sm:$0xff]
    %v441 = vld [vmem:[#allocation4 + $0x40] sm:$0xff]
    %v442 = vld [vmem:[#allocation4 + $0x48] sm:$0xff]
    %v443 = vld [vmem:[#allocation4 + $0x50] sm:$0xff]
    %v444 = vld [vmem:[#allocation4 + $0x58] sm:$0xff]
    %v445 = vld [vmem:[#allocation4 + $0x60] sm:$0xff]
    %v446 = vld [vmem:[#allocation4 + $0x68] sm:$0xff]
    %v447 = vld [vmem:[#allocation4 + $0x70] sm:$0xff]
    %v448 = vld [vmem:[#allocation4 + $0x78] sm:$0xff]
    %v449 = vld [vmem:[#allocation4 + $0x80] sm:$0xff]
    %v450 = vld [vmem:[#allocation4 + $0x88] sm:$0xff]
    %v451 = vld [vmem:[#allocation4 + $0x90] sm:$0xff]
    %v452 = vld [vmem:[#allocation4 + $0x98] sm:$0xff]
    %v453 = vld [vmem:[#allocation4 + $0xa0] sm:$0xff]
    %v454 = vld [vmem:[#allocation4 + $0xa8] sm:$0xff]
    %v455 = vld [vmem:[#allocation4 + $0xb0] sm:$0xff]
    %v456 = vld [vmem:[#allocation4 + $0xb8] sm:$0xff]
    %v457 = vld [vmem:[#allocation4 + $0xc0] sm:$0xff]
    %v458 = vld [vmem:[#allocation4 + $0xc8] sm:$0xff]
    %v459 = vld [vmem:[#allocation4 + $0xd0] sm:$0xff]
    %v460 = vld [vmem:[#allocation4 + $0xd8] sm:$0xff]
    %v461 = vld [vmem:[#allocation4 + $0xe0] sm:$0xff]
    %v462 = vld [vmem:[#allocation4 + $0xe8] sm:$0xff]
    %v463 = vld [vmem:[#allocation4 + $0xf0] sm:$0xff]
    %v464 = vld [vmem:[#allocation4 + $0xf8] sm:$0xff]
    %v497 = vunpack.c.l.b16 %v433
    %v498 = vunpack.c.h.b16 %v433
    %v499 = vunpack.c.l.b16 %v434
    %v500 = vunpack.c.h.b16 %v434
    %v501 = vunpack.c.l.b16 %v435
    %v502 = vunpack.c.h.b16 %v435
    %v503 = vunpack.c.l.b16 %v436
    %v504 = vunpack.c.h.b16 %v436
    %v505 = vunpack.c.l.b16 %v437
    %v506 = vunpack.c.h.b16 %v437
    %v507 = vunpack.c.l.b16 %v438
    %v508 = vunpack.c.h.b16 %v438
    %v509 = vunpack.c.l.b16 %v439
    %v510 = vunpack.c.h.b16 %v439
    %v511 = vunpack.c.l.b16 %v440
    %v512 = vunpack.c.h.b16 %v440
    %v513 = vunpack.c.l.b16 %v441
    %v514 = vunpack.c.h.b16 %v441
    %v515 = vunpack.c.l.b16 %v442
    %v516 = vunpack.c.h.b16 %v442
    %v517 = vunpack.c.l.b16 %v443
    %v518 = vunpack.c.h.b16 %v443
    %v519 = vunpack.c.l.b16 %v444
    %v520 = vunpack.c.h.b16 %v444
    %v521 = vunpack.c.l.b16 %v445
    %v522 = vunpack.c.h.b16 %v445
    %v523 = vunpack.c.l.b16 %v446
    %v524 = vunpack.c.h.b16 %v446
    %v525 = vunpack.c.l.b16 %v447
    %v526 = vunpack.c.h.b16 %v447
    %v527 = vunpack.c.l.b16 %v448
    %v528 = vunpack.c.h.b16 %v448
    %v529 = vunpack.c.l.b16 %v449
    %v530 = vunpack.c.h.b16 %v449
    %v531 = vunpack.c.l.b16 %v450
    %v532 = vunpack.c.h.b16 %v450
    %v533 = vunpack.c.l.b16 %v451
    %v534 = vunpack.c.h.b16 %v451
    %v535 = vunpack.c.l.b16 %v452
    %v536 = vunpack.c.h.b16 %v452
    %v537 = vunpack.c.l.b16 %v453
    %v538 = vunpack.c.h.b16 %v453
    %v539 = vunpack.c.l.b16 %v454
    %v540 = vunpack.c.h.b16 %v454
    %v541 = vunpack.c.l.b16 %v455
    %v542 = vunpack.c.h.b16 %v455
    %v543 = vunpack.c.l.b16 %v456
    %v544 = vunpack.c.h.b16 %v456
    %v545 = vunpack.c.l.b16 %v457
    %v546 = vunpack.c.h.b16 %v457
    %v547 = vunpack.c.l.b16 %v458
    %v548 = vunpack.c.h.b16 %v458
    %v549 = vunpack.c.l.b16 %v459
    %v550 = vunpack.c.h.b16 %v459
    %v551 = vunpack.c.l.b16 %v460
    %v552 = vunpack.c.h.b16 %v460
    %v553 = vunpack.c.l.b16 %v461
    %v554 = vunpack.c.h.b16 %v461
    %v555 = vunpack.c.l.b16 %v462
    %v556 = vunpack.c.h.b16 %v462
    %v557 = vunpack.c.l.b16 %v463
    %v558 = vunpack.c.h.b16 %v463
    %v559 = vunpack.c.l.b16 %v464
    %v560 = vunpack.c.h.b16 %v464
    %v561 = vpack.c.b16 %v499, %v497
    %v562 = vpack.c.b16 %v500, %v498
    %v563 = vpack.c.b16 %v503, %v501
    %v564 = vpack.c.b16 %v504, %v502
    %v565 = vpack.c.b16 %v507, %v505
    %v566 = vpack.c.b16 %v508, %v506
    %v567 = vpack.c.b16 %v511, %v509
    %v568 = vpack.c.b16 %v512, %v510
    %v569 = vpack.c.b16 %v515, %v513
    %v570 = vpack.c.b16 %v516, %v514
    %v571 = vpack.c.b16 %v519, %v517
    %v572 = vpack.c.b16 %v520, %v518
    %v573 = vpack.c.b16 %v523, %v521
    %v574 = vpack.c.b16 %v524, %v522
    %v575 = vpack.c.b16 %v527, %v525
    %v576 = vpack.c.b16 %v528, %v526
    %v577 = vpack.c.b16 %v531, %v529
    %v578 = vpack.c.b16 %v532, %v530
    %v579 = vpack.c.b16 %v535, %v533
    %v580 = vpack.c.b16 %v536, %v534
    %v581 = vpack.c.b16 %v539, %v537
    %v582 = vpack.c.b16 %v540, %v538
    %v583 = vpack.c.b16 %v543, %v541
    %v584 = vpack.c.b16 %v544, %v542
    %v585 = vpack.c.b16 %v547, %v545
    %v586 = vpack.c.b16 %v548, %v546
    %v587 = vpack.c.b16 %v551, %v549
    %v588 = vpack.c.b16 %v552, %v550
    %v589 = vpack.c.b16 %v555, %v553
    %v590 = vpack.c.b16 %v556, %v554
    %v591 = vpack.c.b16 %v559, %v557
    %v592 = vpack.c.b16 %v560, %v558
    %625 = vmatprep.subr.bf16.mxu0 %v576
    %626 = vmatpush1.bf16.msra.mxu0 %v575
    %627 = vmatprep.subr.bf16.mxu0 %v574
    %628 = vmatpush1.bf16.msra.mxu0 %v573
    %629 = vmatprep.subr.bf16.mxu0 %v572
    %630 = vmatpush1.bf16.msra.mxu0 %v571
    %631 = vmatprep.subr.bf16.mxu0 %v570
    %632 = vmatpush1.bf16.msra.mxu0 %v569
    %633 = vmatprep.subr.bf16.mxu0 %v568
    %634 = vmatpush1.bf16.msra.mxu0 %v567
    %635 = vmatprep.subr.bf16.mxu0 %v566
    %636 = vmatpush1.bf16.msra.mxu0 %v565
    %637 = vmatprep.subr.bf16.mxu0 %v564
    %638 = vmatpush1.bf16.msra.mxu0 %v563
    %639 = vmatprep.subr.bf16.mxu0 %v562
    %640 = vmatpush1.bf16.msra.mxu0 %v561
    %641 = vmatprep.subr.bf16.mxu0 %v592
    %642 = vmatpush2.bf16.msra.mxu0 %v591
    %643 = vmatprep.subr.bf16.mxu0 %v590
    %644 = vmatpush2.bf16.msra.mxu0 %v589
    %645 = vmatprep.subr.bf16.mxu0 %v588
    %646 = vmatpush2.bf16.msra.mxu0 %v587
    %647 = vmatprep.subr.bf16.mxu0 %v586
    %648 = vmatpush2.bf16.msra.mxu0 %v585
    %649 = vmatprep.subr.bf16.mxu0 %v584
    %650 = vmatpush2.bf16.msra.mxu0 %v583
    %651 = vmatprep.subr.bf16.mxu0 %v582
    %652 = vmatpush2.bf16.msra.mxu0 %v581
    %653 = vmatprep.subr.bf16.mxu0 %v580
    %654 = vmatpush2.bf16.msra.mxu0 %v579
    %655 = vmatprep.subr.bf16.mxu0 %v578
    %656 = vmatpush2.bf16.msra.mxu0 %v577
    %657 = vmatprep.mubr.bf16.mxu0 %v334
    %658 = vmatmul.mubr.bf16.gmra.mxu0 %v333
    %v659 = vpop.f32.mrf.mxu0
    %v660 = vadd.f32 0.0, %v659
    %v661 = vpop.f32.mrf.mxu0
    %v662 = vadd.f32 0.0, %v661
    %v663 = vpop.f32.mrf.mxu0
    %v664 = vadd.f32 0.0, %v663
    %v665 = vpop.f32.mrf.mxu0
    %v666 = vadd.f32 0.0, %v665
    %667 = vdwg.mxu0
    %v668 = vpack.c.bf16 %v664, %v660
    %v669 = vpack.c.bf16 %v666, %v662
    %v670 = vadd.bf16 %v668, %v333
    %v671 = vadd.bf16 %v669, %v334
    %v673 = vpack.i.b16 %v419, %v419
    %v675 = vlaneseq
    %v676 = vshrl.u32 %v675, 7
    %v677 = vsub.s32 0, %v676
    %v678 = vrot.slane %v673, %v677
    %v680 = vpack.i.b16 %v420, %v420
    %v682 = vlaneseq
    %v683 = vshrl.u32 %v682, 7
    %v684 = vsub.s32 0, %v683
    %v685 = vrot.slane %v680, %v684
    %v686 = vadd.bf16 %v670, %v678
    %v687 = vadd.bf16 %v671, %v685
    %v688 = vmax.bf16 %v686, 0
    %v689 = vmax.bf16 %v687, 0
    %s690 = scalar_lea.vmem [#allocation4], 256
    %v691 = vld [vmem:[%s690] sm:$0xff]
    %v692 = vld [vmem:[%s690 + $0x8] sm:$0xff]
    %v693 = vld [vmem:[%s690 + $0x10] sm:$0xff]
    %v694 = vld [vmem:[%s690 + $0x18] sm:$0xff]
    %v695 = vld [vmem:[%s690 + $0x20] sm:$0xff]
    %v696 = vld [vmem:[%s690 + $0x28] sm:$0xff]
    %v697 = vld [vmem:[%s690 + $0x30] sm:$0xff]
    %v698 = vld [vmem:[%s690 + $0x38] sm:$0xff]
    %v699 = vld [vmem:[%s690 + $0x40] sm:$0xff]
    %v700 = vld [vmem:[%s690 + $0x48] sm:$0xff]
    %v701 = vld [vmem:[%s690 + $0x50] sm:$0xff]
    %v702 = vld [vmem:[%s690 + $0x58] sm:$0xff]
    %v703 = vld [vmem:[%s690 + $0x60] sm:$0xff]
    %v704 = vld [vmem:[%s690 + $0x68] sm:$0xff]
    %v705 = vld [vmem:[%s690 + $0x70] sm:$0xff]
    %v706 = vld [vmem:[%s690 + $0x78] sm:$0xff]
    %v707 = vld [vmem:[%s690 + $0x80] sm:$0xff]
    %v708 = vld [vmem:[%s690 + $0x88] sm:$0xff]
    %v709 = vld [vmem:[%s690 + $0x90] sm:$0xff]
    %v710 = vld [vmem:[%s690 + $0x98] sm:$0xff]
    %v711 = vld [vmem:[%s690 + $0xa0] sm:$0xff]
    %v712 = vld [vmem:[%s690 + $0xa8] sm:$0xff]
    %v713 = vld [vmem:[%s690 + $0xb0] sm:$0xff]
    %v714 = vld [vmem:[%s690 + $0xb8] sm:$0xff]
    %v715 = vld [vmem:[%s690 + $0xc0] sm:$0xff]
    %v716 = vld [vmem:[%s690 + $0xc8] sm:$0xff]
    %v717 = vld [vmem:[%s690 + $0xd0] sm:$0xff]
    %v718 = vld [vmem:[%s690 + $0xd8] sm:$0xff]
    %v719 = vld [vmem:[%s690 + $0xe0] sm:$0xff]
    %v720 = vld [vmem:[%s690 + $0xe8] sm:$0xff]
    %v721 = vld [vmem:[%s690 + $0xf0] sm:$0xff]
    %v722 = vld [vmem:[%s690 + $0xf8] sm:$0xff]
    %v755 = vunpack.c.l.b16 %v691
    %v756 = vunpack.c.h.b16 %v691
    %v757 = vunpack.c.l.b16 %v692
    %v758 = vunpack.c.h.b16 %v692
    %v759 = vunpack.c.l.b16 %v693
    %v760 = vunpack.c.h.b16 %v693
    %v761 = vunpack.c.l.b16 %v694
    %v762 = vunpack.c.h.b16 %v694
    %v763 = vunpack.c.l.b16 %v695
    %v764 = vunpack.c.h.b16 %v695
    %v765 = vunpack.c.l.b16 %v696
    %v766 = vunpack.c.h.b16 %v696
    %v767 = vunpack.c.l.b16 %v697
    %v768 = vunpack.c.h.b16 %v697
    %v769 = vunpack.c.l.b16 %v698
    %v770 = vunpack.c.h.b16 %v698
    %v771 = vunpack.c.l.b16 %v699
    %v772 = vunpack.c.h.b16 %v699
    %v773 = vunpack.c.l.b16 %v700
    %v774 = vunpack.c.h.b16 %v700
    %v775 = vunpack.c.l.b16 %v701
    %v776 = vunpack.c.h.b16 %v701
    %v777 = vunpack.c.l.b16 %v702
    %v778 = vunpack.c.h.b16 %v702
    %v779 = vunpack.c.l.b16 %v703
    %v780 = vunpack.c.h.b16 %v703
    %v781 = vunpack.c.l.b16 %v704
    %v782 = vunpack.c.h.b16 %v704
    %v783 = vunpack.c.l.b16 %v705
    %v784 = vunpack.c.h.b16 %v705
    %v785 = vunpack.c.l.b16 %v706
    %v786 = vunpack.c.h.b16 %v706
    %v787 = vunpack.c.l.b16 %v707
    %v788 = vunpack.c.h.b16 %v707
    %v789 = vunpack.c.l.b16 %v708
    %v790 = vunpack.c.h.b16 %v708
    %v791 = vunpack.c.l.b16 %v709
    %v792 = vunpack.c.h.b16 %v709
    %v793 = vunpack.c.l.b16 %v710
    %v794 = vunpack.c.h.b16 %v710
    %v795 = vunpack.c.l.b16 %v711
    %v796 = vunpack.c.h.b16 %v711
    %v797 = vunpack.c.l.b16 %v712
    %v798 = vunpack.c.h.b16 %v712
    %v799 = vunpack.c.l.b16 %v713
    %v800 = vunpack.c.h.b16 %v713
    %v801 = vunpack.c.l.b16 %v714
    %v802 = vunpack.c.h.b16 %v714
    %v803 = vunpack.c.l.b16 %v715
    %v804 = vunpack.c.h.b16 %v715
    %v805 = vunpack.c.l.b16 %v716
    %v806 = vunpack.c.h.b16 %v716
    %v807 = vunpack.c.l.b16 %v717
    %v808 = vunpack.c.h.b16 %v717
    %v809 = vunpack.c.l.b16 %v718
    %v810 = vunpack.c.h.b16 %v718
    %v811 = vunpack.c.l.b16 %v719
    %v812 = vunpack.c.h.b16 %v719
    %v813 = vunpack.c.l.b16 %v720
    %v814 = vunpack.c.h.b16 %v720
    %v815 = vunpack.c.l.b16 %v721
    %v816 = vunpack.c.h.b16 %v721
    %v817 = vunpack.c.l.b16 %v722
    %v818 = vunpack.c.h.b16 %v722
    %v819 = vpack.c.b16 %v757, %v755
    %v820 = vpack.c.b16 %v758, %v756
    %v821 = vpack.c.b16 %v761, %v759
    %v822 = vpack.c.b16 %v762, %v760
    %v823 = vpack.c.b16 %v765, %v763
    %v824 = vpack.c.b16 %v766, %v764
    %v825 = vpack.c.b16 %v769, %v767
    %v826 = vpack.c.b16 %v770, %v768
    %v827 = vpack.c.b16 %v773, %v771
    %v828 = vpack.c.b16 %v774, %v772
    %v829 = vpack.c.b16 %v777, %v775
    %v830 = vpack.c.b16 %v778, %v776
    %v831 = vpack.c.b16 %v781, %v779
    %v832 = vpack.c.b16 %v782, %v780
    %v833 = vpack.c.b16 %v785, %v783
    %v834 = vpack.c.b16 %v786, %v784
    %v835 = vpack.c.b16 %v789, %v787
    %v836 = vpack.c.b16 %v790, %v788
    %v837 = vpack.c.b16 %v793, %v791
    %v838 = vpack.c.b16 %v794, %v792
    %v839 = vpack.c.b16 %v797, %v795
    %v840 = vpack.c.b16 %v798, %v796
    %v841 = vpack.c.b16 %v801, %v799
    %v842 = vpack.c.b16 %v802, %v800
    %v843 = vpack.c.b16 %v805, %v803
    %v844 = vpack.c.b16 %v806, %v804
    %v845 = vpack.c.b16 %v809, %v807
    %v846 = vpack.c.b16 %v810, %v808
    %v847 = vpack.c.b16 %v813, %v811
    %v848 = vpack.c.b16 %v814, %v812
    %v849 = vpack.c.b16 %v817, %v815
    %v850 = vpack.c.b16 %v818, %v816
    %883 = vmatprep.subr.bf16.mxu0 %v834
    %884 = vmatpush1.bf16.msra.mxu0 %v833
    %885 = vmatprep.subr.bf16.mxu0 %v832
    %886 = vmatpush1.bf16.msra.mxu0 %v831
    %887 = vmatprep.subr.bf16.mxu0 %v830
    %888 = vmatpush1.bf16.msra.mxu0 %v829
    %889 = vmatprep.subr.bf16.mxu0 %v828
    %890 = vmatpush1.bf16.msra.mxu0 %v827
    %891 = vmatprep.subr.bf16.mxu0 %v826
    %892 = vmatpush1.bf16.msra.mxu0 %v825
    %893 = vmatprep.subr.bf16.mxu0 %v824
    %894 = vmatpush1.bf16.msra.mxu0 %v823
    %895 = vmatprep.subr.bf16.mxu0 %v822
    %896 = vmatpush1.bf16.msra.mxu0 %v821
    %897 = vmatprep.subr.bf16.mxu0 %v820
    %898 = vmatpush1.bf16.msra.mxu0 %v819
    %899 = vmatprep.subr.bf16.mxu0 %v850
    %900 = vmatpush2.bf16.msra.mxu0 %v849
    %901 = vmatprep.subr.bf16.mxu0 %v848
    %902 = vmatpush2.bf16.msra.mxu0 %v847
    %903 = vmatprep.subr.bf16.mxu0 %v846
    %904 = vmatpush2.bf16.msra.mxu0 %v845
    %905 = vmatprep.subr.bf16.mxu0 %v844
    %906 = vmatpush2.bf16.msra.mxu0 %v843
    %907 = vmatprep.subr.bf16.mxu0 %v842
    %908 = vmatpush2.bf16.msra.mxu0 %v841
    %909 = vmatprep.subr.bf16.mxu0 %v840
    %910 = vmatpush2.bf16.msra.mxu0 %v839
    %911 = vmatprep.subr.bf16.mxu0 %v838
    %912 = vmatpush2.bf16.msra.mxu0 %v837
    %913 = vmatprep.subr.bf16.mxu0 %v836
    %914 = vmatpush2.bf16.msra.mxu0 %v835
    %915 = vmatprep.mubr.bf16.mxu0 %v689
    %916 = vmatmul.mubr.bf16.gmra.mxu0 %v688
    %v917 = vpop.f32.mrf.mxu0
    %v918 = vadd.f32 0.0, %v917
    %v919 = vpop.f32.mrf.mxu0
    %v920 = vadd.f32 0.0, %v919
    %v921 = vpop.f32.mrf.mxu0
    %v922 = vadd.f32 0.0, %v921
    %v923 = vpop.f32.mrf.mxu0
    %v924 = vadd.f32 0.0, %v923
    %925 = vdwg.mxu0
    %v926 = vpack.c.bf16 %v922, %v918
    %v927 = vpack.c.bf16 %v924, %v920
    %v928 = vadd.bf16 %v926, %v688
    %v929 = vadd.bf16 %v927, %v689
    %v931 = vpack.i.b16 %v421, %v421
    %v933 = vlaneseq
    %v934 = vshrl.u32 %v933, 7
    %v935 = vsub.s32 0, %v934
    %v936 = vrot.slane %v931, %v935
    %v938 = vpack.i.b16 %v422, %v422
    %v940 = vlaneseq
    %v941 = vshrl.u32 %v940, 7
    %v942 = vsub.s32 0, %v941
    %v943 = vrot.slane %v938, %v942
    %v944 = vadd.bf16 %v928, %v936
    %v945 = vadd.bf16 %v929, %v943
    %v946 = vmax.bf16 %v944, 0
    %v947 = vmax.bf16 %v945, 0
    %s948 = scalar_lea.vmem [#allocation4], 512
    %v949 = vld [vmem:[%s948] sm:$0xff]
    %v950 = vld [vmem:[%s948 + $0x8] sm:$0xff]
    %v951 = vld [vmem:[%s948 + $0x10] sm:$0xff]
    %v952 = vld [vmem:[%s948 + $0x18] sm:$0xff]
    %v953 = vld [vmem:[%s948 + $0x20] sm:$0xff]
    %v954 = vld [vmem:[%s948 + $0x28] sm:$0xff]
    %v955 = vld [vmem:[%s948 + $0x30] sm:$0xff]
    %v956 = vld [vmem:[%s948 + $0x38] sm:$0xff]
    %v957 = vld [vmem:[%s948 + $0x40] sm:$0xff]
    %v958 = vld [vmem:[%s948 + $0x48] sm:$0xff]
    %v959 = vld [vmem:[%s948 + $0x50] sm:$0xff]
    %v960 = vld [vmem:[%s948 + $0x58] sm:$0xff]
    %v961 = vld [vmem:[%s948 + $0x60] sm:$0xff]
    %v962 = vld [vmem:[%s948 + $0x68] sm:$0xff]
    %v963 = vld [vmem:[%s948 + $0x70] sm:$0xff]
    %v964 = vld [vmem:[%s948 + $0x78] sm:$0xff]
    %v965 = vld [vmem:[%s948 + $0x80] sm:$0xff]
    %v966 = vld [vmem:[%s948 + $0x88] sm:$0xff]
    %v967 = vld [vmem:[%s948 + $0x90] sm:$0xff]
    %v968 = vld [vmem:[%s948 + $0x98] sm:$0xff]
    %v969 = vld [vmem:[%s948 + $0xa0] sm:$0xff]
    %v970 = vld [vmem:[%s948 + $0xa8] sm:$0xff]
    %v971 = vld [vmem:[%s948 + $0xb0] sm:$0xff]
    %v972 = vld [vmem:[%s948 + $0xb8] sm:$0xff]
    %v973 = vld [vmem:[%s948 + $0xc0] sm:$0xff]
    %v974 = vld [vmem:[%s948 + $0xc8] sm:$0xff]
    %v975 = vld [vmem:[%s948 + $0xd0] sm:$0xff]
    %v976 = vld [vmem:[%s948 + $0xd8] sm:$0xff]
    %v977 = vld [vmem:[%s948 + $0xe0] sm:$0xff]
    %v978 = vld [vmem:[%s948 + $0xe8] sm:$0xff]
    %v979 = vld [vmem:[%s948 + $0xf0] sm:$0xff]
    %v980 = vld [vmem:[%s948 + $0xf8] sm:$0xff]
    %v1013 = vunpack.c.l.b16 %v949
    %v1014 = vunpack.c.h.b16 %v949
    %v1015 = vunpack.c.l.b16 %v950
    %v1016 = vunpack.c.h.b16 %v950
    %v1017 = vunpack.c.l.b16 %v951
    %v1018 = vunpack.c.h.b16 %v951
    %v1019 = vunpack.c.l.b16 %v952
    %v1020 = vunpack.c.h.b16 %v952
    %v1021 = vunpack.c.l.b16 %v953
    %v1022 = vunpack.c.h.b16 %v953
    %v1023 = vunpack.c.l.b16 %v954
    %v1024 = vunpack.c.h.b16 %v954
    %v1025 = vunpack.c.l.b16 %v955
    %v1026 = vunpack.c.h.b16 %v955
    %v1027 = vunpack.c.l.b16 %v956
    %v1028 = vunpack.c.h.b16 %v956
    %v1029 = vunpack.c.l.b16 %v957
    %v1030 = vunpack.c.h.b16 %v957
    %v1031 = vunpack.c.l.b16 %v958
    %v1032 = vunpack.c.h.b16 %v958
    %v1033 = vunpack.c.l.b16 %v959
    %v1034 = vunpack.c.h.b16 %v959
    %v1035 = vunpack.c.l.b16 %v960
    %v1036 = vunpack.c.h.b16 %v960
    %v1037 = vunpack.c.l.b16 %v961
    %v1038 = vunpack.c.h.b16 %v961
    %v1039 = vunpack.c.l.b16 %v962
    %v1040 = vunpack.c.h.b16 %v962
    %v1041 = vunpack.c.l.b16 %v963
    %v1042 = vunpack.c.h.b16 %v963
    %v1043 = vunpack.c.l.b16 %v964
    %v1044 = vunpack.c.h.b16 %v964
    %v1045 = vunpack.c.l.b16 %v965
    %v1046 = vunpack.c.h.b16 %v965
    %v1047 = vunpack.c.l.b16 %v966
    %v1048 = vunpack.c.h.b16 %v966
    %v1049 = vunpack.c.l.b16 %v967
    %v1050 = vunpack.c.h.b16 %v967
    %v1051 = vunpack.c.l.b16 %v968
    %v1052 = vunpack.c.h.b16 %v968
    %v1053 = vunpack.c.l.b16 %v969
    %v1054 = vunpack.c.h.b16 %v969
    %v1055 = vunpack.c.l.b16 %v970
    %v1056 = vunpack.c.h.b16 %v970
    %v1057 = vunpack.c.l.b16 %v971
    %v1058 = vunpack.c.h.b16 %v971
    %v1059 = vunpack.c.l.b16 %v972
    %v1060 = vunpack.c.h.b16 %v972
    %v1061 = vunpack.c.l.b16 %v973
    %v1062 = vunpack.c.h.b16 %v973
    %v1063 = vunpack.c.l.b16 %v974
    %v1064 = vunpack.c.h.b16 %v974
    %v1065 = vunpack.c.l.b16 %v975
    %v1066 = vunpack.c.h.b16 %v975
    %v1067 = vunpack.c.l.b16 %v976
    %v1068 = vunpack.c.h.b16 %v976
    %v1069 = vunpack.c.l.b16 %v977
    %v1070 = vunpack.c.h.b16 %v977
    %v1071 = vunpack.c.l.b16 %v978
    %v1072 = vunpack.c.h.b16 %v978
    %v1073 = vunpack.c.l.b16 %v979
    %v1074 = vunpack.c.h.b16 %v979
    %v1075 = vunpack.c.l.b16 %v980
    %v1076 = vunpack.c.h.b16 %v980
    %v1077 = vpack.c.b16 %v1015, %v1013
    %v1078 = vpack.c.b16 %v1016, %v1014
    %v1079 = vpack.c.b16 %v1019, %v1017
    %v1080 = vpack.c.b16 %v1020, %v1018
    %v1081 = vpack.c.b16 %v1023, %v1021
    %v1082 = vpack.c.b16 %v1024, %v1022
    %v1083 = vpack.c.b16 %v1027, %v1025
    %v1084 = vpack.c.b16 %v1028, %v1026
    %v1085 = vpack.c.b16 %v1031, %v1029
    %v1086 = vpack.c.b16 %v1032, %v1030
    %v1087 = vpack.c.b16 %v1035, %v1033
    %v1088 = vpack.c.b16 %v1036, %v1034
    %v1089 = vpack.c.b16 %v1039, %v1037
    %v1090 = vpack.c.b16 %v1040, %v1038
    %v1091 = vpack.c.b16 %v1043, %v1041
    %v1092 = vpack.c.b16 %v1044, %v1042
    %v1093 = vpack.c.b16 %v1047, %v1045
    %v1094 = vpack.c.b16 %v1048, %v1046
    %v1095 = vpack.c.b16 %v1051, %v1049
    %v1096 = vpack.c.b16 %v1052, %v1050
    %v1097 = vpack.c.b16 %v1055, %v1053
    %v1098 = vpack.c.b16 %v1056, %v1054
    %v1099 = vpack.c.b16 %v1059, %v1057
    %v1100 = vpack.c.b16 %v1060, %v1058
    %v1101 = vpack.c.b16 %v1063, %v1061
    %v1102 = vpack.c.b16 %v1064, %v1062
    %v1103 = vpack.c.b16 %v1067, %v1065
    %v1104 = vpack.c.b16 %v1068, %v1066
    %v1105 = vpack.c.b16 %v1071, %v1069
    %v1106 = vpack.c.b16 %v1072, %v1070
    %v1107 = vpack.c.b16 %v1075, %v1073
    %v1108 = vpack.c.b16 %v1076, %v1074
    %1141 = vmatprep.subr.bf16.mxu0 %v1092
    %1142 = vmatpush1.bf16.msra.mxu0 %v1091
    %1143 = vmatprep.subr.bf16.mxu0 %v1090
    %1144 = vmatpush1.bf16.msra.mxu0 %v1089
    %1145 = vmatprep.subr.bf16.mxu0 %v1088
    %1146 = vmatpush1.bf16.msra.mxu0 %v1087
    %1147 = vmatprep.subr.bf16.mxu0 %v1086
    %1148 = vmatpush1.bf16.msra.mxu0 %v1085
    %1149 = vmatprep.subr.bf16.mxu0 %v1084
    %1150 = vmatpush1.bf16.msra.mxu0 %v1083
    %1151 = vmatprep.subr.bf16.mxu0 %v1082
    %1152 = vmatpush1.bf16.msra.mxu0 %v1081
    %1153 = vmatprep.subr.bf16.mxu0 %v1080
    %1154 = vmatpush1.bf16.msra.mxu0 %v1079
    %1155 = vmatprep.subr.bf16.mxu0 %v1078
    %1156 = vmatpush1.bf16.msra.mxu0 %v1077
    %1157 = vmatprep.subr.bf16.mxu0 %v1108
    %1158 = vmatpush2.bf16.msra.mxu0 %v1107
    %1159 = vmatprep.subr.bf16.mxu0 %v1106
    %1160 = vmatpush2.bf16.msra.mxu0 %v1105
    %1161 = vmatprep.subr.bf16.mxu0 %v1104
    %1162 = vmatpush2.bf16.msra.mxu0 %v1103
    %1163 = vmatprep.subr.bf16.mxu0 %v1102
    %1164 = vmatpush2.bf16.msra.mxu0 %v1101
    %1165 = vmatprep.subr.bf16.mxu0 %v1100
    %1166 = vmatpush2.bf16.msra.mxu0 %v1099
    %1167 = vmatprep.subr.bf16.mxu0 %v1098
    %1168 = vmatpush2.bf16.msra.mxu0 %v1097
    %1169 = vmatprep.subr.bf16.mxu0 %v1096
    %1170 = vmatpush2.bf16.msra.mxu0 %v1095
    %1171 = vmatprep.subr.bf16.mxu0 %v1094
    %1172 = vmatpush2.bf16.msra.mxu0 %v1093
    %1173 = vmatprep.mubr.bf16.mxu0 %v947
    %1174 = vmatmul.mubr.bf16.gmra.mxu0 %v946
    %v1175 = vpop.f32.mrf.mxu0
    %v1176 = vadd.f32 0.0, %v1175
    %v1177 = vpop.f32.mrf.mxu0
    %v1178 = vadd.f32 0.0, %v1177
    %v1179 = vpop.f32.mrf.mxu0
    %v1180 = vadd.f32 0.0, %v1179
    %v1181 = vpop.f32.mrf.mxu0
    %v1182 = vadd.f32 0.0, %v1181
    %1183 = vdwg.mxu0
    %v1184 = vpack.c.bf16 %v1180, %v1176
    %v1185 = vpack.c.bf16 %v1182, %v1178
    %v1186 = vadd.bf16 %v1184, %v946
    %v1187 = vadd.bf16 %v1185, %v947
    %v1189 = vpack.i.b16 %v423, %v423
    %v1191 = vlaneseq
    %v1192 = vshrl.u32 %v1191, 7
    %v1193 = vsub.s32 0, %v1192
    %v1194 = vrot.slane %v1189, %v1193
    %v1196 = vpack.i.b16 %v424, %v424
    %v1198 = vlaneseq
    %v1199 = vshrl.u32 %v1198, 7
    %v1200 = vsub.s32 0, %v1199
    %v1201 = vrot.slane %v1196, %v1200
    %v1202 = vadd.bf16 %v1186, %v1194
    %v1203 = vadd.bf16 %v1187, %v1201
    %v1204 = vmax.bf16 %v1202, 0
    %v1205 = vmax.bf16 %v1203, 0
    %s1206 = scalar_lea.vmem [#allocation4], 768
    %v1207 = vld [vmem:[%s1206] sm:$0xff]
    %v1208 = vld [vmem:[%s1206 + $0x8] sm:$0xff]
    %v1209 = vld [vmem:[%s1206 + $0x10] sm:$0xff]
    %v1210 = vld [vmem:[%s1206 + $0x18] sm:$0xff]
    %v1211 = vld [vmem:[%s1206 + $0x20] sm:$0xff]
    %v1212 = vld [vmem:[%s1206 + $0x28] sm:$0xff]
    %v1213 = vld [vmem:[%s1206 + $0x30] sm:$0xff]
    %v1214 = vld [vmem:[%s1206 + $0x38] sm:$0xff]
    %v1215 = vld [vmem:[%s1206 + $0x40] sm:$0xff]
    %v1216 = vld [vmem:[%s1206 + $0x48] sm:$0xff]
    %v1217 = vld [vmem:[%s1206 + $0x50] sm:$0xff]
    %v1218 = vld [vmem:[%s1206 + $0x58] sm:$0xff]
    %v1219 = vld [vmem:[%s1206 + $0x60] sm:$0xff]
    %v1220 = vld [vmem:[%s1206 + $0x68] sm:$0xff]
    %v1221 = vld [vmem:[%s1206 + $0x70] sm:$0xff]
    %v1222 = vld [vmem:[%s1206 + $0x78] sm:$0xff]
    %v1223 = vld [vmem:[%s1206 + $0x80] sm:$0xff]
    %v1224 = vld [vmem:[%s1206 + $0x88] sm:$0xff]
    %v1225 = vld [vmem:[%s1206 + $0x90] sm:$0xff]
    %v1226 = vld [vmem:[%s1206 + $0x98] sm:$0xff]
    %v1227 = vld [vmem:[%s1206 + $0xa0] sm:$0xff]
    %v1228 = vld [vmem:[%s1206 + $0xa8] sm:$0xff]
    %v1229 = vld [vmem:[%s1206 + $0xb0] sm:$0xff]
    %v1230 = vld [vmem:[%s1206 + $0xb8] sm:$0xff]
    %v1231 = vld [vmem:[%s1206 + $0xc0] sm:$0xff]
    %v1232 = vld [vmem:[%s1206 + $0xc8] sm:$0xff]
    %v1233 = vld [vmem:[%s1206 + $0xd0] sm:$0xff]
    %v1234 = vld [vmem:[%s1206 + $0xd8] sm:$0xff]
    %v1235 = vld [vmem:[%s1206 + $0xe0] sm:$0xff]
    %v1236 = vld [vmem:[%s1206 + $0xe8] sm:$0xff]
    %v1237 = vld [vmem:[%s1206 + $0xf0] sm:$0xff]
    %v1238 = vld [vmem:[%s1206 + $0xf8] sm:$0xff]
    %v1271 = vunpack.c.l.b16 %v1207
    %v1272 = vunpack.c.h.b16 %v1207
    %v1273 = vunpack.c.l.b16 %v1208
    %v1274 = vunpack.c.h.b16 %v1208
    %v1275 = vunpack.c.l.b16 %v1209
    %v1276 = vunpack.c.h.b16 %v1209
    %v1277 = vunpack.c.l.b16 %v1210
    %v1278 = vunpack.c.h.b16 %v1210
    %v1279 = vunpack.c.l.b16 %v1211
    %v1280 = vunpack.c.h.b16 %v1211
    %v1281 = vunpack.c.l.b16 %v1212
    %v1282 = vunpack.c.h.b16 %v1212
    %v1283 = vunpack.c.l.b16 %v1213
    %v1284 = vunpack.c.h.b16 %v1213
    %v1285 = vunpack.c.l.b16 %v1214
    %v1286 = vunpack.c.h.b16 %v1214
    %v1287 = vunpack.c.l.b16 %v1215
    %v1288 = vunpack.c.h.b16 %v1215
    %v1289 = vunpack.c.l.b16 %v1216
    %v1290 = vunpack.c.h.b16 %v1216
    %v1291 = vunpack.c.l.b16 %v1217
    %v1292 = vunpack.c.h.b16 %v1217
    %v1293 = vunpack.c.l.b16 %v1218
    %v1294 = vunpack.c.h.b16 %v1218
    %v1295 = vunpack.c.l.b16 %v1219
    %v1296 = vunpack.c.h.b16 %v1219
    %v1297 = vunpack.c.l.b16 %v1220
    %v1298 = vunpack.c.h.b16 %v1220
    %v1299 = vunpack.c.l.b16 %v1221
    %v1300 = vunpack.c.h.b16 %v1221
    %v1301 = vunpack.c.l.b16 %v1222
    %v1302 = vunpack.c.h.b16 %v1222
    %v1303 = vunpack.c.l.b16 %v1223
    %v1304 = vunpack.c.h.b16 %v1223
    %v1305 = vunpack.c.l.b16 %v1224
    %v1306 = vunpack.c.h.b16 %v1224
    %v1307 = vunpack.c.l.b16 %v1225
    %v1308 = vunpack.c.h.b16 %v1225
    %v1309 = vunpack.c.l.b16 %v1226
    %v1310 = vunpack.c.h.b16 %v1226
    %v1311 = vunpack.c.l.b16 %v1227
    %v1312 = vunpack.c.h.b16 %v1227
    %v1313 = vunpack.c.l.b16 %v1228
    %v1314 = vunpack.c.h.b16 %v1228
    %v1315 = vunpack.c.l.b16 %v1229
    %v1316 = vunpack.c.h.b16 %v1229
    %v1317 = vunpack.c.l.b16 %v1230
    %v1318 = vunpack.c.h.b16 %v1230
    %v1319 = vunpack.c.l.b16 %v1231
    %v1320 = vunpack.c.h.b16 %v1231
    %v1321 = vunpack.c.l.b16 %v1232
    %v1322 = vunpack.c.h.b16 %v1232
    %v1323 = vunpack.c.l.b16 %v1233
    %v1324 = vunpack.c.h.b16 %v1233
    %v1325 = vunpack.c.l.b16 %v1234
    %v1326 = vunpack.c.h.b16 %v1234
    %v1327 = vunpack.c.l.b16 %v1235
    %v1328 = vunpack.c.h.b16 %v1235
    %v1329 = vunpack.c.l.b16 %v1236
    %v1330 = vunpack.c.h.b16 %v1236
    %v1331 = vunpack.c.l.b16 %v1237
    %v1332 = vunpack.c.h.b16 %v1237
    %v1333 = vunpack.c.l.b16 %v1238
    %v1334 = vunpack.c.h.b16 %v1238
    %v1335 = vpack.c.b16 %v1273, %v1271
    %v1336 = vpack.c.b16 %v1274, %v1272
    %v1337 = vpack.c.b16 %v1277, %v1275
    %v1338 = vpack.c.b16 %v1278, %v1276
    %v1339 = vpack.c.b16 %v1281, %v1279
    %v1340 = vpack.c.b16 %v1282, %v1280
    %v1341 = vpack.c.b16 %v1285, %v1283
    %v1342 = vpack.c.b16 %v1286, %v1284
    %v1343 = vpack.c.b16 %v1289, %v1287
    %v1344 = vpack.c.b16 %v1290, %v1288
    %v1345 = vpack.c.b16 %v1293, %v1291
    %v1346 = vpack.c.b16 %v1294, %v1292
    %v1347 = vpack.c.b16 %v1297, %v1295
    %v1348 = vpack.c.b16 %v1298, %v1296
    %v1349 = vpack.c.b16 %v1301, %v1299
    %v1350 = vpack.c.b16 %v1302, %v1300
    %v1351 = vpack.c.b16 %v1305, %v1303
    %v1352 = vpack.c.b16 %v1306, %v1304
    %v1353 = vpack.c.b16 %v1309, %v1307
    %v1354 = vpack.c.b16 %v1310, %v1308
    %v1355 = vpack.c.b16 %v1313, %v1311
    %v1356 = vpack.c.b16 %v1314, %v1312
    %v1357 = vpack.c.b16 %v1317, %v1315
    %v1358 = vpack.c.b16 %v1318, %v1316
    %v1359 = vpack.c.b16 %v1321, %v1319
    %v1360 = vpack.c.b16 %v1322, %v1320
    %v1361 = vpack.c.b16 %v1325, %v1323
    %v1362 = vpack.c.b16 %v1326, %v1324
    %v1363 = vpack.c.b16 %v1329, %v1327
    %v1364 = vpack.c.b16 %v1330, %v1328
    %v1365 = vpack.c.b16 %v1333, %v1331
    %v1366 = vpack.c.b16 %v1334, %v1332
    %1399 = vmatprep.subr.bf16.mxu0 %v1350
    %1400 = vmatpush1.bf16.msra.mxu0 %v1349
    %1401 = vmatprep.subr.bf16.mxu0 %v1348
    %1402 = vmatpush1.bf16.msra.mxu0 %v1347
    %1403 = vmatprep.subr.bf16.mxu0 %v1346
    %1404 = vmatpush1.bf16.msra.mxu0 %v1345
    %1405 = vmatprep.subr.bf16.mxu0 %v1344
    %1406 = vmatpush1.bf16.msra.mxu0 %v1343
    %1407 = vmatprep.subr.bf16.mxu0 %v1342
    %1408 = vmatpush1.bf16.msra.mxu0 %v1341
    %1409 = vmatprep.subr.bf16.mxu0 %v1340
    %1410 = vmatpush1.bf16.msra.mxu0 %v1339
    %1411 = vmatprep.subr.bf16.mxu0 %v1338
    %1412 = vmatpush1.bf16.msra.mxu0 %v1337
    %1413 = vmatprep.subr.bf16.mxu0 %v1336
    %1414 = vmatpush1.bf16.msra.mxu0 %v1335
    %1415 = vmatprep.subr.bf16.mxu0 %v1366
    %1416 = vmatpush2.bf16.msra.mxu0 %v1365
    %1417 = vmatprep.subr.bf16.mxu0 %v1364
    %1418 = vmatpush2.bf16.msra.mxu0 %v1363
    %1419 = vmatprep.subr.bf16.mxu0 %v1362
    %1420 = vmatpush2.bf16.msra.mxu0 %v1361
    %1421 = vmatprep.subr.bf16.mxu0 %v1360
    %1422 = vmatpush2.bf16.msra.mxu0 %v1359
    %1423 = vmatprep.subr.bf16.mxu0 %v1358
    %1424 = vmatpush2.bf16.msra.mxu0 %v1357
    %1425 = vmatprep.subr.bf16.mxu0 %v1356
    %1426 = vmatpush2.bf16.msra.mxu0 %v1355
    %1427 = vmatprep.subr.bf16.mxu0 %v1354
    %1428 = vmatpush2.bf16.msra.mxu0 %v1353
    %1429 = vmatprep.subr.bf16.mxu0 %v1352
    %1430 = vmatpush2.bf16.msra.mxu0 %v1351
    %1431 = vmatprep.mubr.bf16.mxu0 %v1205
    %1432 = vmatmul.mubr.bf16.gmra.mxu0 %v1204
    %v1433 = vpop.f32.mrf.mxu0
    %v1434 = vadd.f32 0.0, %v1433
    %v1435 = vpop.f32.mrf.mxu0
    %v1436 = vadd.f32 0.0, %v1435
    %v1437 = vpop.f32.mrf.mxu0
    %v1438 = vadd.f32 0.0, %v1437
    %v1439 = vpop.f32.mrf.mxu0
    %v1440 = vadd.f32 0.0, %v1439
    %1441 = vdwg.mxu0
    %v1442 = vpack.c.bf16 %v1438, %v1434
    %v1443 = vpack.c.bf16 %v1440, %v1436
    %v1444 = vadd.bf16 %v1442, %v1204
    %v1445 = vadd.bf16 %v1443, %v1205
    %v1447 = vpack.i.b16 %v425, %v425
    %v1449 = vlaneseq
    %v1450 = vshrl.u32 %v1449, 7
    %v1451 = vsub.s32 0, %v1450
    %v1452 = vrot.slane %v1447, %v1451
    %v1454 = vpack.i.b16 %v426, %v426
    %v1456 = vlaneseq
    %v1457 = vshrl.u32 %v1456, 7
    %v1458 = vsub.s32 0, %v1457
    %v1459 = vrot.slane %v1454, %v1458
    %v1460 = vadd.bf16 %v1444, %v1452
    %v1461 = vadd.bf16 %v1445, %v1459
    %v1462 = vmax.bf16 %v1460, 0
    %v1463 = vmax.bf16 %v1461, 0
    %s1464 = scalar_lea.vmem [#allocation4], 1024
    %v1465 = vld [vmem:[%s1464] sm:$0xff]
    %v1466 = vld [vmem:[%s1464 + $0x8] sm:$0xff]
    %v1467 = vld [vmem:[%s1464 + $0x10] sm:$0xff]
    %v1468 = vld [vmem:[%s1464 + $0x18] sm:$0xff]
    %v1469 = vld [vmem:[%s1464 + $0x20] sm:$0xff]
    %v1470 = vld [vmem:[%s1464 + $0x28] sm:$0xff]
    %v1471 = vld [vmem:[%s1464 + $0x30] sm:$0xff]
    %v1472 = vld [vmem:[%s1464 + $0x38] sm:$0xff]
    %v1473 = vld [vmem:[%s1464 + $0x40] sm:$0xff]
    %v1474 = vld [vmem:[%s1464 + $0x48] sm:$0xff]
    %v1475 = vld [vmem:[%s1464 + $0x50] sm:$0xff]
    %v1476 = vld [vmem:[%s1464 + $0x58] sm:$0xff]
    %v1477 = vld [vmem:[%s1464 + $0x60] sm:$0xff]
    %v1478 = vld [vmem:[%s1464 + $0x68] sm:$0xff]
    %v1479 = vld [vmem:[%s1464 + $0x70] sm:$0xff]
    %v1480 = vld [vmem:[%s1464 + $0x78] sm:$0xff]
    %v1481 = vld [vmem:[%s1464 + $0x80] sm:$0xff]
    %v1482 = vld [vmem:[%s1464 + $0x88] sm:$0xff]
    %v1483 = vld [vmem:[%s1464 + $0x90] sm:$0xff]
    %v1484 = vld [vmem:[%s1464 + $0x98] sm:$0xff]
    %v1485 = vld [vmem:[%s1464 + $0xa0] sm:$0xff]
    %v1486 = vld [vmem:[%s1464 + $0xa8] sm:$0xff]
    %v1487 = vld [vmem:[%s1464 + $0xb0] sm:$0xff]
    %v1488 = vld [vmem:[%s1464 + $0xb8] sm:$0xff]
    %v1489 = vld [vmem:[%s1464 + $0xc0] sm:$0xff]
    %v1490 = vld [vmem:[%s1464 + $0xc8] sm:$0xff]
    %v1491 = vld [vmem:[%s1464 + $0xd0] sm:$0xff]
    %v1492 = vld [vmem:[%s1464 + $0xd8] sm:$0xff]
    %v1493 = vld [vmem:[%s1464 + $0xe0] sm:$0xff]
    %v1494 = vld [vmem:[%s1464 + $0xe8] sm:$0xff]
    %v1495 = vld [vmem:[%s1464 + $0xf0] sm:$0xff]
    %v1496 = vld [vmem:[%s1464 + $0xf8] sm:$0xff]
    %v1529 = vunpack.c.l.b16 %v1465
    %v1530 = vunpack.c.h.b16 %v1465
    %v1531 = vunpack.c.l.b16 %v1466
    %v1532 = vunpack.c.h.b16 %v1466
    %v1533 = vunpack.c.l.b16 %v1467
    %v1534 = vunpack.c.h.b16 %v1467
    %v1535 = vunpack.c.l.b16 %v1468
    %v1536 = vunpack.c.h.b16 %v1468
    %v1537 = vunpack.c.l.b16 %v1469
    %v1538 = vunpack.c.h.b16 %v1469
    %v1539 = vunpack.c.l.b16 %v1470
    %v1540 = vunpack.c.h.b16 %v1470
    %v1541 = vunpack.c.l.b16 %v1471
    %v1542 = vunpack.c.h.b16 %v1471
    %v1543 = vunpack.c.l.b16 %v1472
    %v1544 = vunpack.c.h.b16 %v1472
    %v1545 = vunpack.c.l.b16 %v1473
    %v1546 = vunpack.c.h.b16 %v1473
    %v1547 = vunpack.c.l.b16 %v1474
    %v1548 = vunpack.c.h.b16 %v1474
    %v1549 = vunpack.c.l.b16 %v1475
    %v1550 = vunpack.c.h.b16 %v1475
    %v1551 = vunpack.c.l.b16 %v1476
    %v1552 = vunpack.c.h.b16 %v1476
    %v1553 = vunpack.c.l.b16 %v1477
    %v1554 = vunpack.c.h.b16 %v1477
    %v1555 = vunpack.c.l.b16 %v1478
    %v1556 = vunpack.c.h.b16 %v1478
    %v1557 = vunpack.c.l.b16 %v1479
    %v1558 = vunpack.c.h.b16 %v1479
    %v1559 = vunpack.c.l.b16 %v1480
    %v1560 = vunpack.c.h.b16 %v1480
    %v1561 = vunpack.c.l.b16 %v1481
    %v1562 = vunpack.c.h.b16 %v1481
    %v1563 = vunpack.c.l.b16 %v1482
    %v1564 = vunpack.c.h.b16 %v1482
    %v1565 = vunpack.c.l.b16 %v1483
    %v1566 = vunpack.c.h.b16 %v1483
    %v1567 = vunpack.c.l.b16 %v1484
    %v1568 = vunpack.c.h.b16 %v1484
    %v1569 = vunpack.c.l.b16 %v1485
    %v1570 = vunpack.c.h.b16 %v1485
    %v1571 = vunpack.c.l.b16 %v1486
    %v1572 = vunpack.c.h.b16 %v1486
    %v1573 = vunpack.c.l.b16 %v1487
    %v1574 = vunpack.c.h.b16 %v1487
    %v1575 = vunpack.c.l.b16 %v1488
    %v1576 = vunpack.c.h.b16 %v1488
    %v1577 = vunpack.c.l.b16 %v1489
    %v1578 = vunpack.c.h.b16 %v1489
    %v1579 = vunpack.c.l.b16 %v1490
    %v1580 = vunpack.c.h.b16 %v1490
    %v1581 = vunpack.c.l.b16 %v1491
    %v1582 = vunpack.c.h.b16 %v1491
    %v1583 = vunpack.c.l.b16 %v1492
    %v1584 = vunpack.c.h.b16 %v1492
    %v1585 = vunpack.c.l.b16 %v1493
    %v1586 = vunpack.c.h.b16 %v1493
    %v1587 = vunpack.c.l.b16 %v1494
    %v1588 = vunpack.c.h.b16 %v1494
    %v1589 = vunpack.c.l.b16 %v1495
    %v1590 = vunpack.c.h.b16 %v1495
    %v1591 = vunpack.c.l.b16 %v1496
    %v1592 = vunpack.c.h.b16 %v1496
    %v1593 = vpack.c.b16 %v1531, %v1529
    %v1594 = vpack.c.b16 %v1532, %v1530
    %v1595 = vpack.c.b16 %v1535, %v1533
    %v1596 = vpack.c.b16 %v1536, %v1534
    %v1597 = vpack.c.b16 %v1539, %v1537
    %v1598 = vpack.c.b16 %v1540, %v1538
    %v1599 = vpack.c.b16 %v1543, %v1541
    %v1600 = vpack.c.b16 %v1544, %v1542
    %v1601 = vpack.c.b16 %v1547, %v1545
    %v1602 = vpack.c.b16 %v1548, %v1546
    %v1603 = vpack.c.b16 %v1551, %v1549
    %v1604 = vpack.c.b16 %v1552, %v1550
    %v1605 = vpack.c.b16 %v1555, %v1553
    %v1606 = vpack.c.b16 %v1556, %v1554
    %v1607 = vpack.c.b16 %v1559, %v1557
    %v1608 = vpack.c.b16 %v1560, %v1558
    %v1609 = vpack.c.b16 %v1563, %v1561
    %v1610 = vpack.c.b16 %v1564, %v1562
    %v1611 = vpack.c.b16 %v1567, %v1565
    %v1612 = vpack.c.b16 %v1568, %v1566
    %v1613 = vpack.c.b16 %v1571, %v1569
    %v1614 = vpack.c.b16 %v1572, %v1570
    %v1615 = vpack.c.b16 %v1575, %v1573
    %v1616 = vpack.c.b16 %v1576, %v1574
    %v1617 = vpack.c.b16 %v1579, %v1577
    %v1618 = vpack.c.b16 %v1580, %v1578
    %v1619 = vpack.c.b16 %v1583, %v1581
    %v1620 = vpack.c.b16 %v1584, %v1582
    %v1621 = vpack.c.b16 %v1587, %v1585
    %v1622 = vpack.c.b16 %v1588, %v1586
    %v1623 = vpack.c.b16 %v1591, %v1589
    %v1624 = vpack.c.b16 %v1592, %v1590
    %1657 = vmatprep.subr.bf16.mxu0 %v1608
    %1658 = vmatpush1.bf16.msra.mxu0 %v1607
    %1659 = vmatprep.subr.bf16.mxu0 %v1606
    %1660 = vmatpush1.bf16.msra.mxu0 %v1605
    %1661 = vmatprep.subr.bf16.mxu0 %v1604
    %1662 = vmatpush1.bf16.msra.mxu0 %v1603
    %1663 = vmatprep.subr.bf16.mxu0 %v1602
    %1664 = vmatpush1.bf16.msra.mxu0 %v1601
    %1665 = vmatprep.subr.bf16.mxu0 %v1600
    %1666 = vmatpush1.bf16.msra.mxu0 %v1599
    %1667 = vmatprep.subr.bf16.mxu0 %v1598
    %1668 = vmatpush1.bf16.msra.mxu0 %v1597
    %1669 = vmatprep.subr.bf16.mxu0 %v1596
    %1670 = vmatpush1.bf16.msra.mxu0 %v1595
    %1671 = vmatprep.subr.bf16.mxu0 %v1594
    %1672 = vmatpush1.bf16.msra.mxu0 %v1593
    %1673 = vmatprep.subr.bf16.mxu0 %v1624
    %1674 = vmatpush2.bf16.msra.mxu0 %v1623
    %1675 = vmatprep.subr.bf16.mxu0 %v1622
    %1676 = vmatpush2.bf16.msra.mxu0 %v1621
    %1677 = vmatprep.subr.bf16.mxu0 %v1620
    %1678 = vmatpush2.bf16.msra.mxu0 %v1619
    %1679 = vmatprep.subr.bf16.mxu0 %v1618
    %1680 = vmatpush2.bf16.msra.mxu0 %v1617
    %1681 = vmatprep.subr.bf16.mxu0 %v1616
    %1682 = vmatpush2.bf16.msra.mxu0 %v1615
    %1683 = vmatprep.subr.bf16.mxu0 %v1614
    %1684 = vmatpush2.bf16.msra.mxu0 %v1613
    %1685 = vmatprep.subr.bf16.mxu0 %v1612
    %1686 = vmatpush2.bf16.msra.mxu0 %v1611
    %1687 = vmatprep.subr.bf16.mxu0 %v1610
    %1688 = vmatpush2.bf16.msra.mxu0 %v1609
    %1689 = vmatprep.mubr.bf16.mxu0 %v1463
    %1690 = vmatmul.mubr.bf16.gmra.mxu0 %v1462
    %v1691 = vpop.f32.mrf.mxu0
    %v1692 = vadd.f32 0.0, %v1691
    %v1693 = vpop.f32.mrf.mxu0
    %v1694 = vadd.f32 0.0, %v1693
    %v1695 = vpop.f32.mrf.mxu0
    %v1696 = vadd.f32 0.0, %v1695
    %v1697 = vpop.f32.mrf.mxu0
    %v1698 = vadd.f32 0.0, %v1697
    %1699 = vdwg.mxu0
    %v1700 = vpack.c.bf16 %v1696, %v1692
    %v1701 = vpack.c.bf16 %v1698, %v1694
    %v1702 = vadd.bf16 %v1700, %v1462
    %v1703 = vadd.bf16 %v1701, %v1463
    %v1705 = vpack.i.b16 %v427, %v427
    %v1707 = vlaneseq
    %v1708 = vshrl.u32 %v1707, 7
    %v1709 = vsub.s32 0, %v1708
    %v1710 = vrot.slane %v1705, %v1709
    %v1712 = vpack.i.b16 %v428, %v428
    %v1714 = vlaneseq
    %v1715 = vshrl.u32 %v1714, 7
    %v1716 = vsub.s32 0, %v1715
    %v1717 = vrot.slane %v1712, %v1716
    %v1718 = vadd.bf16 %v1702, %v1710
    %v1719 = vadd.bf16 %v1703, %v1717
    %v1720 = vmax.bf16 %v1718, 0
    %v1721 = vmax.bf16 %v1719, 0
    %s1722 = scalar_lea.vmem [#allocation4], 1280
    %v1723 = vld [vmem:[%s1722] sm:$0xff]
    %v1724 = vld [vmem:[%s1722 + $0x8] sm:$0xff]
    %v1725 = vld [vmem:[%s1722 + $0x10] sm:$0xff]
    %v1726 = vld [vmem:[%s1722 + $0x18] sm:$0xff]
    %v1727 = vld [vmem:[%s1722 + $0x20] sm:$0xff]
    %v1728 = vld [vmem:[%s1722 + $0x28] sm:$0xff]
    %v1729 = vld [vmem:[%s1722 + $0x30] sm:$0xff]
    %v1730 = vld [vmem:[%s1722 + $0x38] sm:$0xff]
    %v1731 = vld [vmem:[%s1722 + $0x40] sm:$0xff]
    %v1732 = vld [vmem:[%s1722 + $0x48] sm:$0xff]
    %v1733 = vld [vmem:[%s1722 + $0x50] sm:$0xff]
    %v1734 = vld [vmem:[%s1722 + $0x58] sm:$0xff]
    %v1735 = vld [vmem:[%s1722 + $0x60] sm:$0xff]
    %v1736 = vld [vmem:[%s1722 + $0x68] sm:$0xff]
    %v1737 = vld [vmem:[%s1722 + $0x70] sm:$0xff]
    %v1738 = vld [vmem:[%s1722 + $0x78] sm:$0xff]
    %v1739 = vld [vmem:[%s1722 + $0x80] sm:$0xff]
    %v1740 = vld [vmem:[%s1722 + $0x88] sm:$0xff]
    %v1741 = vld [vmem:[%s1722 + $0x90] sm:$0xff]
    %v1742 = vld [vmem:[%s1722 + $0x98] sm:$0xff]
    %v1743 = vld [vmem:[%s1722 + $0xa0] sm:$0xff]
    %v1744 = vld [vmem:[%s1722 + $0xa8] sm:$0xff]
    %v1745 = vld [vmem:[%s1722 + $0xb0] sm:$0xff]
    %v1746 = vld [vmem:[%s1722 + $0xb8] sm:$0xff]
    %v1747 = vld [vmem:[%s1722 + $0xc0] sm:$0xff]
    %v1748 = vld [vmem:[%s1722 + $0xc8] sm:$0xff]
    %v1749 = vld [vmem:[%s1722 + $0xd0] sm:$0xff]
    %v1750 = vld [vmem:[%s1722 + $0xd8] sm:$0xff]
    %v1751 = vld [vmem:[%s1722 + $0xe0] sm:$0xff]
    %v1752 = vld [vmem:[%s1722 + $0xe8] sm:$0xff]
    %v1753 = vld [vmem:[%s1722 + $0xf0] sm:$0xff]
    %v1754 = vld [vmem:[%s1722 + $0xf8] sm:$0xff]
    %v1787 = vunpack.c.l.b16 %v1723
    %v1788 = vunpack.c.h.b16 %v1723
    %v1789 = vunpack.c.l.b16 %v1724
    %v1790 = vunpack.c.h.b16 %v1724
    %v1791 = vunpack.c.l.b16 %v1725
    %v1792 = vunpack.c.h.b16 %v1725
    %v1793 = vunpack.c.l.b16 %v1726
    %v1794 = vunpack.c.h.b16 %v1726
    %v1795 = vunpack.c.l.b16 %v1727
    %v1796 = vunpack.c.h.b16 %v1727
    %v1797 = vunpack.c.l.b16 %v1728
    %v1798 = vunpack.c.h.b16 %v1728
    %v1799 = vunpack.c.l.b16 %v1729
    %v1800 = vunpack.c.h.b16 %v1729
    %v1801 = vunpack.c.l.b16 %v1730
    %v1802 = vunpack.c.h.b16 %v1730
    %v1803 = vunpack.c.l.b16 %v1731
    %v1804 = vunpack.c.h.b16 %v1731
    %v1805 = vunpack.c.l.b16 %v1732
    %v1806 = vunpack.c.h.b16 %v1732
    %v1807 = vunpack.c.l.b16 %v1733
    %v1808 = vunpack.c.h.b16 %v1733
    %v1809 = vunpack.c.l.b16 %v1734
    %v1810 = vunpack.c.h.b16 %v1734
    %v1811 = vunpack.c.l.b16 %v1735
    %v1812 = vunpack.c.h.b16 %v1735
    %v1813 = vunpack.c.l.b16 %v1736
    %v1814 = vunpack.c.h.b16 %v1736
    %v1815 = vunpack.c.l.b16 %v1737
    %v1816 = vunpack.c.h.b16 %v1737
    %v1817 = vunpack.c.l.b16 %v1738
    %v1818 = vunpack.c.h.b16 %v1738
    %v1819 = vunpack.c.l.b16 %v1739
    %v1820 = vunpack.c.h.b16 %v1739
    %v1821 = vunpack.c.l.b16 %v1740
    %v1822 = vunpack.c.h.b16 %v1740
    %v1823 = vunpack.c.l.b16 %v1741
    %v1824 = vunpack.c.h.b16 %v1741
    %v1825 = vunpack.c.l.b16 %v1742
    %v1826 = vunpack.c.h.b16 %v1742
    %v1827 = vunpack.c.l.b16 %v1743
    %v1828 = vunpack.c.h.b16 %v1743
    %v1829 = vunpack.c.l.b16 %v1744
    %v1830 = vunpack.c.h.b16 %v1744
    %v1831 = vunpack.c.l.b16 %v1745
    %v1832 = vunpack.c.h.b16 %v1745
    %v1833 = vunpack.c.l.b16 %v1746
    %v1834 = vunpack.c.h.b16 %v1746
    %v1835 = vunpack.c.l.b16 %v1747
    %v1836 = vunpack.c.h.b16 %v1747
    %v1837 = vunpack.c.l.b16 %v1748
    %v1838 = vunpack.c.h.b16 %v1748
    %v1839 = vunpack.c.l.b16 %v1749
    %v1840 = vunpack.c.h.b16 %v1749
    %v1841 = vunpack.c.l.b16 %v1750
    %v1842 = vunpack.c.h.b16 %v1750
    %v1843 = vunpack.c.l.b16 %v1751
    %v1844 = vunpack.c.h.b16 %v1751
    %v1845 = vunpack.c.l.b16 %v1752
    %v1846 = vunpack.c.h.b16 %v1752
    %v1847 = vunpack.c.l.b16 %v1753
    %v1848 = vunpack.c.h.b16 %v1753
    %v1849 = vunpack.c.l.b16 %v1754
    %v1850 = vunpack.c.h.b16 %v1754
    %v1851 = vpack.c.b16 %v1789, %v1787
    %v1852 = vpack.c.b16 %v1790, %v1788
    %v1853 = vpack.c.b16 %v1793, %v1791
    %v1854 = vpack.c.b16 %v1794, %v1792
    %v1855 = vpack.c.b16 %v1797, %v1795
    %v1856 = vpack.c.b16 %v1798, %v1796
    %v1857 = vpack.c.b16 %v1801, %v1799
    %v1858 = vpack.c.b16 %v1802, %v1800
    %v1859 = vpack.c.b16 %v1805, %v1803
    %v1860 = vpack.c.b16 %v1806, %v1804
    %v1861 = vpack.c.b16 %v1809, %v1807
    %v1862 = vpack.c.b16 %v1810, %v1808
    %v1863 = vpack.c.b16 %v1813, %v1811
    %v1864 = vpack.c.b16 %v1814, %v1812
    %v1865 = vpack.c.b16 %v1817, %v1815
    %v1866 = vpack.c.b16 %v1818, %v1816
    %v1867 = vpack.c.b16 %v1821, %v1819
    %v1868 = vpack.c.b16 %v1822, %v1820
    %v1869 = vpack.c.b16 %v1825, %v1823
    %v1870 = vpack.c.b16 %v1826, %v1824
    %v1871 = vpack.c.b16 %v1829, %v1827
    %v1872 = vpack.c.b16 %v1830, %v1828
    %v1873 = vpack.c.b16 %v1833, %v1831
    %v1874 = vpack.c.b16 %v1834, %v1832
    %v1875 = vpack.c.b16 %v1837, %v1835
    %v1876 = vpack.c.b16 %v1838, %v1836
    %v1877 = vpack.c.b16 %v1841, %v1839
    %v1878 = vpack.c.b16 %v1842, %v1840
    %v1879 = vpack.c.b16 %v1845, %v1843
    %v1880 = vpack.c.b16 %v1846, %v1844
    %v1881 = vpack.c.b16 %v1849, %v1847
    %v1882 = vpack.c.b16 %v1850, %v1848
    %1915 = vmatprep.subr.bf16.mxu0 %v1866
    %1916 = vmatpush1.bf16.msra.mxu0 %v1865
    %1917 = vmatprep.subr.bf16.mxu0 %v1864
    %1918 = vmatpush1.bf16.msra.mxu0 %v1863
    %1919 = vmatprep.subr.bf16.mxu0 %v1862
    %1920 = vmatpush1.bf16.msra.mxu0 %v1861
    %1921 = vmatprep.subr.bf16.mxu0 %v1860
    %1922 = vmatpush1.bf16.msra.mxu0 %v1859
    %1923 = vmatprep.subr.bf16.mxu0 %v1858
    %1924 = vmatpush1.bf16.msra.mxu0 %v1857
    %1925 = vmatprep.subr.bf16.mxu0 %v1856
    %1926 = vmatpush1.bf16.msra.mxu0 %v1855
    %1927 = vmatprep.subr.bf16.mxu0 %v1854
    %1928 = vmatpush1.bf16.msra.mxu0 %v1853
    %1929 = vmatprep.subr.bf16.mxu0 %v1852
    %1930 = vmatpush1.bf16.msra.mxu0 %v1851
    %1931 = vmatprep.subr.bf16.mxu0 %v1882
    %1932 = vmatpush2.bf16.msra.mxu0 %v1881
    %1933 = vmatprep.subr.bf16.mxu0 %v1880
    %1934 = vmatpush2.bf16.msra.mxu0 %v1879
    %1935 = vmatprep.subr.bf16.mxu0 %v1878
    %1936 = vmatpush2.bf16.msra.mxu0 %v1877
    %1937 = vmatprep.subr.bf16.mxu0 %v1876
    %1938 = vmatpush2.bf16.msra.mxu0 %v1875
    %1939 = vmatprep.subr.bf16.mxu0 %v1874
    %1940 = vmatpush2.bf16.msra.mxu0 %v1873
    %1941 = vmatprep.subr.bf16.mxu0 %v1872
    %1942 = vmatpush2.bf16.msra.mxu0 %v1871
    %1943 = vmatprep.subr.bf16.mxu0 %v1870
    %1944 = vmatpush2.bf16.msra.mxu0 %v1869
    %1945 = vmatprep.subr.bf16.mxu0 %v1868
    %1946 = vmatpush2.bf16.msra.mxu0 %v1867
    %1947 = vmatprep.mubr.bf16.mxu0 %v1721
    %1948 = vmatmul.mubr.bf16.gmra.mxu0 %v1720
    %v1949 = vpop.f32.mrf.mxu0
    %v1950 = vadd.f32 0.0, %v1949
    %v1951 = vpop.f32.mrf.mxu0
    %v1952 = vadd.f32 0.0, %v1951
    %v1953 = vpop.f32.mrf.mxu0
    %v1954 = vadd.f32 0.0, %v1953
    %v1955 = vpop.f32.mrf.mxu0
    %v1956 = vadd.f32 0.0, %v1955
    %1957 = vdwg.mxu0
    %v1958 = vpack.c.bf16 %v1954, %v1950
    %v1959 = vpack.c.bf16 %v1956, %v1952
    %v1960 = vadd.bf16 %v1958, %v1720
    %v1961 = vadd.bf16 %v1959, %v1721
    %v1963 = vpack.i.b16 %v429, %v429
    %v1965 = vlaneseq
    %v1966 = vshrl.u32 %v1965, 7
    %v1967 = vsub.s32 0, %v1966
    %v1968 = vrot.slane %v1963, %v1967
    %v1970 = vpack.i.b16 %v430, %v430
    %v1972 = vlaneseq
    %v1973 = vshrl.u32 %v1972, 7
    %v1974 = vsub.s32 0, %v1973
    %v1975 = vrot.slane %v1970, %v1974
    %v1976 = vadd.bf16 %v1960, %v1968
    %v1977 = vadd.bf16 %v1961, %v1975
    %v1978 = vmax.bf16 %v1976, 0
    %v1979 = vmax.bf16 %v1977, 0
    %s1980 = scalar_lea.vmem [#allocation4], 1536
    %v1981 = vld [vmem:[%s1980] sm:$0xff]
    %v1982 = vld [vmem:[%s1980 + $0x8] sm:$0xff]
    %v1983 = vld [vmem:[%s1980 + $0x10] sm:$0xff]
    %v1984 = vld [vmem:[%s1980 + $0x18] sm:$0xff]
    %v1985 = vld [vmem:[%s1980 + $0x20] sm:$0xff]
    %v1986 = vld [vmem:[%s1980 + $0x28] sm:$0xff]
    %v1987 = vld [vmem:[%s1980 + $0x30] sm:$0xff]
    %v1988 = vld [vmem:[%s1980 + $0x38] sm:$0xff]
    %v1989 = vld [vmem:[%s1980 + $0x40] sm:$0xff]
    %v1990 = vld [vmem:[%s1980 + $0x48] sm:$0xff]
    %v1991 = vld [vmem:[%s1980 + $0x50] sm:$0xff]
    %v1992 = vld [vmem:[%s1980 + $0x58] sm:$0xff]
    %v1993 = vld [vmem:[%s1980 + $0x60] sm:$0xff]
    %v1994 = vld [vmem:[%s1980 + $0x68] sm:$0xff]
    %v1995 = vld [vmem:[%s1980 + $0x70] sm:$0xff]
    %v1996 = vld [vmem:[%s1980 + $0x78] sm:$0xff]
    %v1997 = vld [vmem:[%s1980 + $0x80] sm:$0xff]
    %v1998 = vld [vmem:[%s1980 + $0x88] sm:$0xff]
    %v1999 = vld [vmem:[%s1980 + $0x90] sm:$0xff]
    %v2000 = vld [vmem:[%s1980 + $0x98] sm:$0xff]
    %v2001 = vld [vmem:[%s1980 + $0xa0] sm:$0xff]
    %v2002 = vld [vmem:[%s1980 + $0xa8] sm:$0xff]
    %v2003 = vld [vmem:[%s1980 + $0xb0] sm:$0xff]
    %v2004 = vld [vmem:[%s1980 + $0xb8] sm:$0xff]
    %v2005 = vld [vmem:[%s1980 + $0xc0] sm:$0xff]
    %v2006 = vld [vmem:[%s1980 + $0xc8] sm:$0xff]
    %v2007 = vld [vmem:[%s1980 + $0xd0] sm:$0xff]
    %v2008 = vld [vmem:[%s1980 + $0xd8] sm:$0xff]
    %v2009 = vld [vmem:[%s1980 + $0xe0] sm:$0xff]
    %v2010 = vld [vmem:[%s1980 + $0xe8] sm:$0xff]
    %v2011 = vld [vmem:[%s1980 + $0xf0] sm:$0xff]
    %v2012 = vld [vmem:[%s1980 + $0xf8] sm:$0xff]
    %v2045 = vunpack.c.l.b16 %v1981
    %v2046 = vunpack.c.h.b16 %v1981
    %v2047 = vunpack.c.l.b16 %v1982
    %v2048 = vunpack.c.h.b16 %v1982
    %v2049 = vunpack.c.l.b16 %v1983
    %v2050 = vunpack.c.h.b16 %v1983
    %v2051 = vunpack.c.l.b16 %v1984
    %v2052 = vunpack.c.h.b16 %v1984
    %v2053 = vunpack.c.l.b16 %v1985
    %v2054 = vunpack.c.h.b16 %v1985
    %v2055 = vunpack.c.l.b16 %v1986
    %v2056 = vunpack.c.h.b16 %v1986
    %v2057 = vunpack.c.l.b16 %v1987
    %v2058 = vunpack.c.h.b16 %v1987
    %v2059 = vunpack.c.l.b16 %v1988
    %v2060 = vunpack.c.h.b16 %v1988
    %v2061 = vunpack.c.l.b16 %v1989
    %v2062 = vunpack.c.h.b16 %v1989
    %v2063 = vunpack.c.l.b16 %v1990
    %v2064 = vunpack.c.h.b16 %v1990
    %v2065 = vunpack.c.l.b16 %v1991
    %v2066 = vunpack.c.h.b16 %v1991
    %v2067 = vunpack.c.l.b16 %v1992
    %v2068 = vunpack.c.h.b16 %v1992
    %v2069 = vunpack.c.l.b16 %v1993
    %v2070 = vunpack.c.h.b16 %v1993
    %v2071 = vunpack.c.l.b16 %v1994
    %v2072 = vunpack.c.h.b16 %v1994
    %v2073 = vunpack.c.l.b16 %v1995
    %v2074 = vunpack.c.h.b16 %v1995
    %v2075 = vunpack.c.l.b16 %v1996
    %v2076 = vunpack.c.h.b16 %v1996
    %v2077 = vunpack.c.l.b16 %v1997
    %v2078 = vunpack.c.h.b16 %v1997
    %v2079 = vunpack.c.l.b16 %v1998
    %v2080 = vunpack.c.h.b16 %v1998
    %v2081 = vunpack.c.l.b16 %v1999
    %v2082 = vunpack.c.h.b16 %v1999
    %v2083 = vunpack.c.l.b16 %v2000
    %v2084 = vunpack.c.h.b16 %v2000
    %v2085 = vunpack.c.l.b16 %v2001
    %v2086 = vunpack.c.h.b16 %v2001
    %v2087 = vunpack.c.l.b16 %v2002
    %v2088 = vunpack.c.h.b16 %v2002
    %v2089 = vunpack.c.l.b16 %v2003
    %v2090 = vunpack.c.h.b16 %v2003
    %v2091 = vunpack.c.l.b16 %v2004
    %v2092 = vunpack.c.h.b16 %v2004
    %v2093 = vunpack.c.l.b16 %v2005
    %v2094 = vunpack.c.h.b16 %v2005
    %v2095 = vunpack.c.l.b16 %v2006
    %v2096 = vunpack.c.h.b16 %v2006
    %v2097 = vunpack.c.l.b16 %v2007
    %v2098 = vunpack.c.h.b16 %v2007
    %v2099 = vunpack.c.l.b16 %v2008
    %v2100 = vunpack.c.h.b16 %v2008
    %v2101 = vunpack.c.l.b16 %v2009
    %v2102 = vunpack.c.h.b16 %v2009
    %v2103 = vunpack.c.l.b16 %v2010
    %v2104 = vunpack.c.h.b16 %v2010
    %v2105 = vunpack.c.l.b16 %v2011
    %v2106 = vunpack.c.h.b16 %v2011
    %v2107 = vunpack.c.l.b16 %v2012
    %v2108 = vunpack.c.h.b16 %v2012
    %v2109 = vpack.c.b16 %v2047, %v2045
    %v2110 = vpack.c.b16 %v2048, %v2046
    %v2111 = vpack.c.b16 %v2051, %v2049
    %v2112 = vpack.c.b16 %v2052, %v2050
    %v2113 = vpack.c.b16 %v2055, %v2053
    %v2114 = vpack.c.b16 %v2056, %v2054
    %v2115 = vpack.c.b16 %v2059, %v2057
    %v2116 = vpack.c.b16 %v2060, %v2058
    %v2117 = vpack.c.b16 %v2063, %v2061
    %v2118 = vpack.c.b16 %v2064, %v2062
    %v2119 = vpack.c.b16 %v2067, %v2065
    %v2120 = vpack.c.b16 %v2068, %v2066
    %v2121 = vpack.c.b16 %v2071, %v2069
    %v2122 = vpack.c.b16 %v2072, %v2070
    %v2123 = vpack.c.b16 %v2075, %v2073
    %v2124 = vpack.c.b16 %v2076, %v2074
    %v2125 = vpack.c.b16 %v2079, %v2077
    %v2126 = vpack.c.b16 %v2080, %v2078
    %v2127 = vpack.c.b16 %v2083, %v2081
    %v2128 = vpack.c.b16 %v2084, %v2082
    %v2129 = vpack.c.b16 %v2087, %v2085
    %v2130 = vpack.c.b16 %v2088, %v2086
    %v2131 = vpack.c.b16 %v2091, %v2089
    %v2132 = vpack.c.b16 %v2092, %v2090
    %v2133 = vpack.c.b16 %v2095, %v2093
    %v2134 = vpack.c.b16 %v2096, %v2094
    %v2135 = vpack.c.b16 %v2099, %v2097
    %v2136 = vpack.c.b16 %v2100, %v2098
    %v2137 = vpack.c.b16 %v2103, %v2101
    %v2138 = vpack.c.b16 %v2104, %v2102
    %v2139 = vpack.c.b16 %v2107, %v2105
    %v2140 = vpack.c.b16 %v2108, %v2106
    %2173 = vmatprep.subr.bf16.mxu0 %v2124
    %2174 = vmatpush1.bf16.msra.mxu0 %v2123
    %2175 = vmatprep.subr.bf16.mxu0 %v2122
    %2176 = vmatpush1.bf16.msra.mxu0 %v2121
    %2177 = vmatprep.subr.bf16.mxu0 %v2120
    %2178 = vmatpush1.bf16.msra.mxu0 %v2119
    %2179 = vmatprep.subr.bf16.mxu0 %v2118
    %2180 = vmatpush1.bf16.msra.mxu0 %v2117
    %2181 = vmatprep.subr.bf16.mxu0 %v2116
    %2182 = vmatpush1.bf16.msra.mxu0 %v2115
    %2183 = vmatprep.subr.bf16.mxu0 %v2114
    %2184 = vmatpush1.bf16.msra.mxu0 %v2113
    %2185 = vmatprep.subr.bf16.mxu0 %v2112
    %2186 = vmatpush1.bf16.msra.mxu0 %v2111
    %2187 = vmatprep.subr.bf16.mxu0 %v2110
    %2188 = vmatpush1.bf16.msra.mxu0 %v2109
    %2189 = vmatprep.subr.bf16.mxu0 %v2140
    %2190 = vmatpush2.bf16.msra.mxu0 %v2139
    %2191 = vmatprep.subr.bf16.mxu0 %v2138
    %2192 = vmatpush2.bf16.msra.mxu0 %v2137
    %2193 = vmatprep.subr.bf16.mxu0 %v2136
    %2194 = vmatpush2.bf16.msra.mxu0 %v2135
    %2195 = vmatprep.subr.bf16.mxu0 %v2134
    %2196 = vmatpush2.bf16.msra.mxu0 %v2133
    %2197 = vmatprep.subr.bf16.mxu0 %v2132
    %2198 = vmatpush2.bf16.msra.mxu0 %v2131
    %2199 = vmatprep.subr.bf16.mxu0 %v2130
    %2200 = vmatpush2.bf16.msra.mxu0 %v2129
    %2201 = vmatprep.subr.bf16.mxu0 %v2128
    %2202 = vmatpush2.bf16.msra.mxu0 %v2127
    %2203 = vmatprep.subr.bf16.mxu0 %v2126
    %2204 = vmatpush2.bf16.msra.mxu0 %v2125
    %2205 = vmatprep.mubr.bf16.mxu0 %v1979
    %2206 = vmatmul.mubr.bf16.gmra.mxu0 %v1978
    %v2207 = vpop.f32.mrf.mxu0
    %v2208 = vadd.f32 0.0, %v2207
    %v2209 = vpop.f32.mrf.mxu0
    %v2210 = vadd.f32 0.0, %v2209
    %v2211 = vpop.f32.mrf.mxu0
    %v2212 = vadd.f32 0.0, %v2211
    %v2213 = vpop.f32.mrf.mxu0
    %v2214 = vadd.f32 0.0, %v2213
    %2215 = vdwg.mxu0
    %v2216 = vpack.c.bf16 %v2212, %v2208
    %v2217 = vpack.c.bf16 %v2214, %v2210
    %v2218 = vadd.bf16 %v2216, %v1978
    %v2219 = vadd.bf16 %v2217, %v1979
    %v2221 = vpack.i.b16 %v431, %v431
    %v2223 = vlaneseq
    %v2224 = vshrl.u32 %v2223, 7
    %v2225 = vsub.s32 0, %v2224
    %v2226 = vrot.slane %v2221, %v2225
    %v2228 = vpack.i.b16 %v432, %v432
    %v2230 = vlaneseq
    %v2231 = vshrl.u32 %v2230, 7
    %v2232 = vsub.s32 0, %v2231
    %v2233 = vrot.slane %v2228, %v2232
    %v2234 = vadd.bf16 %v2218, %v2226
    %v2235 = vadd.bf16 %v2219, %v2233
    %v2236 = vmax.bf16 %v2234, 0
    %v2237 = vmax.bf16 %v2235, 0
    %v2238 = vld [vmem:[#allocation6] sm:$0xf]
    %v2239 = vld [vmem:[#allocation6 + $0x4] sm:$0xf]
    %v2240 = vld [vmem:[#allocation6 + $0x8] sm:$0xf]
    %v2241 = vld [vmem:[#allocation6 + $0xc] sm:$0xf]
    %v2242 = vld [vmem:[#allocation6 + $0x10] sm:$0xf]
    %v2243 = vld [vmem:[#allocation6 + $0x14] sm:$0xf]
    %v2244 = vld [vmem:[#allocation6 + $0x18] sm:$0xf]
    %v2245 = vld [vmem:[#allocation6 + $0x1c] sm:$0xf]
    %v2246 = vld [vmem:[#allocation6 + $0x20] sm:$0xf]
    %v2247 = vld [vmem:[#allocation6 + $0x24] sm:$0xf]
    %v2248 = vld [vmem:[#allocation6 + $0x28] sm:$0xf]
    %v2249 = vld [vmem:[#allocation6 + $0x2c] sm:$0xf]
    %v2250 = vld [vmem:[#allocation6 + $0x30] sm:$0xf]
    %v2251 = vld [vmem:[#allocation6 + $0x34] sm:$0xf]
    %v2252 = vld [vmem:[#allocation6 + $0x38] sm:$0xf]
    %v2253 = vld [vmem:[#allocation6 + $0x3c] sm:$0xf]
    %v2254 = vld [vmem:[#allocation6 + $0x40] sm:$0xf]
    %v2255 = vld [vmem:[#allocation6 + $0x44] sm:$0xf]
    %v2256 = vld [vmem:[#allocation6 + $0x48] sm:$0xf]
    %v2257 = vld [vmem:[#allocation6 + $0x4c] sm:$0xf]
    %v2258 = vld [vmem:[#allocation6 + $0x50] sm:$0xf]
    %v2259 = vld [vmem:[#allocation6 + $0x54] sm:$0xf]
    %v2260 = vld [vmem:[#allocation6 + $0x58] sm:$0xf]
    %v2261 = vld [vmem:[#allocation6 + $0x5c] sm:$0xf]
    %v2262 = vld [vmem:[#allocation6 + $0x60] sm:$0xf]
    %v2263 = vld [vmem:[#allocation6 + $0x64] sm:$0xf]
    %v2264 = vld [vmem:[#allocation6 + $0x68] sm:$0xf]
    %v2265 = vld [vmem:[#allocation6 + $0x6c] sm:$0xf]
    %v2266 = vld [vmem:[#allocation6 + $0x70] sm:$0xf]
    %v2267 = vld [vmem:[#allocation6 + $0x74] sm:$0xf]
    %v2268 = vld [vmem:[#allocation6 + $0x78] sm:$0xf]
    %v2269 = vld [vmem:[#allocation6 + $0x7c] sm:$0xf]
    %v2270 = vld [vmem:[%s7] sm:$0x1]
    %v2272 = vlaneseq
    %v2273 = vshrl.u32 %v2272, 7
    %v2274 = vsub.s32 0, %v2273
    %v2275 = vrot.slane %v2270, %v2274
    %v2309 = vunpack.c.l.b16 %v2238
    %v2310 = vunpack.c.l.b16 %v2239
    %v2311 = vunpack.c.l.b16 %v2240
    %v2312 = vunpack.c.l.b16 %v2241
    %v2313 = vunpack.c.l.b16 %v2242
    %v2314 = vunpack.c.l.b16 %v2243
    %v2315 = vunpack.c.l.b16 %v2244
    %v2316 = vunpack.c.l.b16 %v2245
    %v2317 = vunpack.c.l.b16 %v2246
    %v2318 = vunpack.c.l.b16 %v2247
    %v2319 = vunpack.c.l.b16 %v2248
    %v2320 = vunpack.c.l.b16 %v2249
    %v2321 = vunpack.c.l.b16 %v2250
    %v2322 = vunpack.c.l.b16 %v2251
    %v2323 = vunpack.c.l.b16 %v2252
    %v2324 = vunpack.c.l.b16 %v2253
    %v2325 = vunpack.c.l.b16 %v2254
    %v2326 = vunpack.c.l.b16 %v2255
    %v2327 = vunpack.c.l.b16 %v2256
    %v2328 = vunpack.c.l.b16 %v2257
    %v2329 = vunpack.c.l.b16 %v2258
    %v2330 = vunpack.c.l.b16 %v2259
    %v2331 = vunpack.c.l.b16 %v2260
    %v2332 = vunpack.c.l.b16 %v2261
    %v2333 = vunpack.c.l.b16 %v2262
    %v2334 = vunpack.c.l.b16 %v2263
    %v2335 = vunpack.c.l.b16 %v2264
    %v2336 = vunpack.c.l.b16 %v2265
    %v2337 = vunpack.c.l.b16 %v2266
    %v2338 = vunpack.c.l.b16 %v2267
    %v2339 = vunpack.c.l.b16 %v2268
    %v2340 = vunpack.c.l.b16 %v2269
    %v2341 = vpack.c.b16 %v2310, %v2309
    %v2342 = vpack.c.b16 %v2312, %v2311
    %v2343 = vpack.c.b16 %v2314, %v2313
    %v2344 = vpack.c.b16 %v2316, %v2315
    %v2345 = vpack.c.b16 %v2318, %v2317
    %v2346 = vpack.c.b16 %v2320, %v2319
    %v2347 = vpack.c.b16 %v2322, %v2321
    %v2348 = vpack.c.b16 %v2324, %v2323
    %v2349 = vpack.c.b16 %v2326, %v2325
    %v2350 = vpack.c.b16 %v2328, %v2327
    %v2351 = vpack.c.b16 %v2330, %v2329
    %v2352 = vpack.c.b16 %v2332, %v2331
    %v2353 = vpack.c.b16 %v2334, %v2333
    %v2354 = vpack.c.b16 %v2336, %v2335
    %v2355 = vpack.c.b16 %v2338, %v2337
    %v2356 = vpack.c.b16 %v2340, %v2339
    %2373 = vmatprep.subr.bf16.mxu0 0
    %2374 = vmatpush1.bf16.msra.mxu0 %v2348
    %2375 = vmatprep.subr.bf16.mxu0 0
    %2376 = vmatpush1.bf16.msra.mxu0 %v2347
    %2377 = vmatprep.subr.bf16.mxu0 0
    %2378 = vmatpush1.bf16.msra.mxu0 %v2346
    %2379 = vmatprep.subr.bf16.mxu0 0
    %2380 = vmatpush1.bf16.msra.mxu0 %v2345
    %2381 = vmatprep.subr.bf16.mxu0 0
    %2382 = vmatpush1.bf16.msra.mxu0 %v2344
    %2383 = vmatprep.subr.bf16.mxu0 0
    %2384 = vmatpush1.bf16.msra.mxu0 %v2343
    %2385 = vmatprep.subr.bf16.mxu0 0
    %2386 = vmatpush1.bf16.msra.mxu0 %v2342
    %2387 = vmatprep.subr.bf16.mxu0 0
    %2388 = vmatpush1.bf16.msra.mxu0 %v2341
    %2389 = vmatprep.subr.bf16.mxu0 0
    %2390 = vmatpush2.bf16.msra.mxu0 %v2356
    %2391 = vmatprep.subr.bf16.mxu0 0
    %2392 = vmatpush2.bf16.msra.mxu0 %v2355
    %2393 = vmatprep.subr.bf16.mxu0 0
    %2394 = vmatpush2.bf16.msra.mxu0 %v2354
    %2395 = vmatprep.subr.bf16.mxu0 0
    %2396 = vmatpush2.bf16.msra.mxu0 %v2353
    %2397 = vmatprep.subr.bf16.mxu0 0
    %2398 = vmatpush2.bf16.msra.mxu0 %v2352
    %2399 = vmatprep.subr.bf16.mxu0 0
    %2400 = vmatpush2.bf16.msra.mxu0 %v2351
    %2401 = vmatprep.subr.bf16.mxu0 0
    %2402 = vmatpush2.bf16.msra.mxu0 %v2350
    %2403 = vmatprep.subr.bf16.mxu0 0
    %2404 = vmatpush2.bf16.msra.mxu0 %v2349
    %2405 = vmatprep.mubr.bf16.mxu0 %v2237
    %2406 = vmatmul.mubr.bf16.gmra.mxu0 %v2236
    %v2407 = vpop.f32.mrf.mxu0
    %v2408 = vadd.f32 %v2275, %v2407
    %v2409 = vpop.f32.mrf.mxu0
    %v2410 = vpop.f32.mrf.mxu0
    %v2411 = vadd.f32 %v2275, %v2410
    %v2412 = vpop.f32.mrf.mxu0
    %2413 = vdwg.mxu0
    %v2414 = vmax.f32 %v2408, 0.0
    %v2415 = vmax.f32 %v2411, 0.0
    %v2416 = vpack.c.bf16 %v2415, %v2414
    %v2418 = vunpack.c.l.b16 %v2416
    %v2419 = vunpack.c.h.b16 %v2416
    %v2420 = vpack.c.b16 %v2418, %v2418
    %v2421 = vpack.c.b16 %v2419, %v2419
    %2424 = vst [vmem:[%s8] sm:$0xf] %v2420
    %2425 = vst [vmem:[%s8 + $0x4] sm:$0xf] %v2421
    // Predicated region
    $region46: #{mlp_2_class_resnet_forward.1} parent=1 // pred_check
      _
    $region47: #{mlp_2_class_resnet_forward.1} parent=1 // pred_check_branch
      %2427 = sbr.rel (0) target = $region49
    $region48: #{mlp_2_class_resnet_forward.1} parent=1 // pred_region
      _
    $region49: #{mlp_2_class_resnet_forward.1} parent=1 // pred_fallthru
      _
    // Predicated region
    $region50: #{mlp_2_class_resnet_forward.1} parent=1 // pred_check
      _
    $region51: #{mlp_2_class_resnet_forward.1} parent=1 // pred_check_branch
      %2429 = sbr.rel (0) target = $region53
    $region52: #{mlp_2_class_resnet_forward.1} parent=1 // pred_region
      _
    $region53: #{mlp_2_class_resnet_forward.1} parent=1 // pred_fallthru
      _
    %2430 = vsyncpa [#allocation3], 1
    %2431 = vsyncpa [#allocation5], 1

</llo_original>
